<compile_context>
chip_gen: v6e
topology: v6e:2x2x1
jax: 0.10.0
libtpu: 0.0.40
codegen_flags: <defaults>
</compile_context>

<pallas_src>
import functools

import jax
import jax.numpy as jnp
from jax import lax
from jax.experimental import pallas as pl
from jax.experimental.pallas import tpu as pltpu


def _cdiv(a, b):
    return -(-a // b)


def _round_up(x, m):
    return ((x + m - 1) // m) * m


def _vmem_limit_bytes():
    """Per-chip scoped-VMEM limit: ~75% of physical VMEM, capped at 100 MiB."""
    cap = 64 * 1024 * 1024  # conservative fallback (v7x physical per-core VMEM)
    try:
        cap = int(pltpu.get_tpu_info().vmem_capacity_bytes)
    except Exception:
        pass
    return min(int(cap * 3 // 4), 100 * 1024 * 1024)


def _pick_tile_rows(H, W, Cin, Cp, N, vmem_budget):
    """Output rows computed per grid step, sized against a VMEM budget."""
    Wp = W + 2
    cin_lanes = _round_up(Cin, 128)          # lane-padded VMEM footprint of slab
    per_row = (2 * Wp * cin_lanes * 2        # input slab, bf16, double-buffered
               + 2 * Wp * Cp * 2             # output tile, bf16, double-buffered
               + Wp * Cp * 4)                # f32 accumulator value
    fixed = 2 * 9 * Cin * Cp * 2 + 64 * 1024  # weights (2 buffers) + bias/slack
    th = max(8, (vmem_budget - fixed) // per_row)
    th = int(min(th, H))
    th = max(th, 1)
    # Keep the grid long enough to pipeline DMAs and feed both v7x TensorCores.
    while N * _cdiv(H, th) < 8 and th > 8:
        th = max(8, th // 2)
    return th


def _conv3x3_kernel(x_ref, w_ref, b_ref, o_ref, *, Wp, Cin, Mh):
    # x_ref: (1, Ms, Cin)  bf16 flattened padded row-slab, Ms = (Th+3)*Wp
    # w_ref: (9*Cin, Cp)   bf16, tap-major rows: [(dy*3+dx)*Cin + cin, cout]
    # b_ref: (1, Cp)       f32 bias
    # o_ref: (1, Mh, Cp)   bf16, Mh = Th*Wp (cols >= W of each row are garbage)
    acc = None
    for dy in range(3):
        for dx in range(3):
            t = dy * 3 + dx
            off = dy * Wp + dx                        # static flat tap offset
            patch = x_ref[0, off:off + Mh, :]         # (Mh, Cin) bf16
            w_tap = w_ref[t * Cin:(t + 1) * Cin, :]   # (Cin, Cp) bf16
            part = jnp.dot(patch, w_tap, preferred_element_type=jnp.float32)
            acc = part if acc is None else acc + part
    o_ref[0, :, :] = (acc + b_ref[...]).astype(o_ref.dtype)


def conv3x3(x, weight, bias, use_refl=True, tile_rows=None,
            compute_dtype=jnp.bfloat16, nchw_out=True):
    """ReflectionPad2d(1)/ZeroPad2d(1) + Conv2d(Cin, Cout, 3).

    x: (N, Cin, H, W) NCHW; weight: (Cout, Cin, 3, 3); bias: (Cout,).
    Note: reflect padding (like ReflectionPad2d(1)) requires H, W >= 2.
    """
    N, Cin, H, W = x.shape
    Cout = weight.shape[0]
    Wp = W + 2
    Cp = _round_up(Cout, 128)

    vmem_limit = _vmem_limit_bytes()
    if tile_rows is None:
        Th = _pick_tile_rows(H, W, Cin, Cp, N, vmem_budget=vmem_limit * 6 // 10)
    else:
        Th = max(1, min(int(tile_rows), H))
    nt = _cdiv(H, Th)
    # Slab = Th+3 padded rows: 2-row conv halo + 1 spare row so the dy=dx=2 tap
    # slice stays in bounds even for the (discarded) garbage columns.
    Ms = (Th + 3) * Wp
    Mh = Th * Wp

    # --- activation staging: bf16 NHWC, pad, cut into overlapping row slabs ---
    xb = jnp.transpose(x.astype(compute_dtype), (0, 2, 3, 1))       # (N,H,W,Cin)
    mode = "reflect" if use_refl else "constant"
    xp = jnp.pad(xb, ((0, 0), (1, 1), (1, 1), (0, 0)), mode=mode)   # (N,H+2,Wp,Cin)
    extra_rows = nt * Th + 3 - (H + 2)                              # >= 1
    xp = jnp.pad(xp, ((0, 0), (0, extra_rows), (0, 0), (0, 0)))     # zero filler
    xt = jnp.stack([xp[:, i * Th:i * Th + Th + 3] for i in range(nt)], axis=1)
    xt = xt.reshape(N * nt, Ms, Cin)                                # flat slabs

    # --- weights / bias: tap-major rows, lane-dense (padded) output channels ---
    w2 = jnp.transpose(weight, (2, 3, 1, 0)).reshape(9 * Cin, Cout)
    w2 = jnp.pad(w2, ((0, 0), (0, Cp - Cout))).astype(compute_dtype)
    b2 = jnp.pad(bias, (0, Cp - Cout)).reshape(1, Cp).astype(jnp.float32)

    kernel = functools.partial(_conv3x3_kernel, Wp=Wp, Cin=Cin, Mh=Mh)

    out = pl.pallas_call(
        kernel,
        out_shape=jax.ShapeDtypeStruct((N * nt, Mh, Cp), compute_dtype),
        grid=(N * nt,),
        in_specs=[
            pl.BlockSpec((1, Ms, Cin), lambda i: (i, 0, 0)),   # streamed slabs
            pl.BlockSpec((9 * Cin, Cp), lambda i: (0, 0)),     # weights resident
            pl.BlockSpec((1, Cp), lambda i: (0, 0)),           # bias resident
        ],
        out_specs=pl.BlockSpec((1, Mh, Cp), lambda i: (i, 0, 0)),
        compiler_params=pltpu.CompilerParams(
            dimension_semantics=("parallel",),
            vmem_limit_bytes=vmem_limit),
    )(xt, w2, b2)

    # strip garbage columns, padded rows and padded output channels
    out = out.reshape(N, nt, Th, Wp, Cp)[:, :, :, :W, :Cout]
    out = out.reshape(N, nt * Th, W, Cout)[:, :H]                   # (N,H,W,Cout)
    if nchw_out:
        out = jnp.transpose(out, (0, 3, 1, 2))   # skip via nchw_out=False if the
    return out.astype(x.dtype)                   # consumer accepts NHWC


def reference_conv3x3(x, weight, bias, use_refl=True):
    """Plain-JAX f32 reference with identical semantics (NCHW)."""
    mode = "reflect" if use_refl else "constant"
    xp = jnp.pad(x, ((0, 0), (0, 0), (1, 1), (1, 1)), mode=mode)
    out = lax.conv_general_dilated(
        xp, weight, window_strides=(1, 1), padding="VALID",
        dimension_numbers=("NCHW", "OIHW", "NCHW"))
    return out + bias[None, :, None, None]


if __name__ == "__main__":
    key = jax.random.PRNGKey(0)
    k_x, k_w, k_b = jax.random.split(key, 3)

    N, Cin, H, W = 2, 4, 16, 16
    Cout = 8

    x = jax.random.normal(k_x, (N, Cin, H, W), dtype=jnp.float32)
    # deterministic, PyTorch-like uniform init scale: 1/sqrt(Cin*3*3)
    fan_in = Cin * 3 * 3
    bound = 1.0 / (fan_in ** 0.5)
    weight = jax.random.uniform(k_w, (Cout, Cin, 3, 3),
                                minval=-bound, maxval=bound, dtype=jnp.float32)
    bias = jax.random.uniform(k_b, (Cout,), minval=-bound, maxval=bound,
                              dtype=jnp.float32)

    conv_refl = jax.jit(functools.partial(conv3x3, use_refl=True))
    conv_zero = jax.jit(functools.partial(conv3x3, use_refl=False))

    # reflection-pad path (module default)
    out = jax.block_until_ready(conv_refl(x, weight, bias))
    ref = jax.block_until_ready(reference_conv3x3(x, weight, bias, True))
    assert out.shape == (N, Cout, H, W)
    # bf16 MXU operands with f32 accumulation -> widened tolerance vs f32 ref
    assert jnp.allclose(out, ref, atol=2e-2, rtol=2e-2), \
        float(jnp.max(jnp.abs(out - ref)))

    # zero-pad path (use_refl=False) shares the same kernel
    out0 = jax.block_until_ready(conv_zero(x, weight, bias))
    ref0 = jax.block_until_ready(reference_conv3x3(x, weight, bias, False))
    assert jnp.allclose(out0, ref0, atol=2e-2, rtol=2e-2), \
        float(jnp.max(jnp.abs(out0 - ref0)))

    print("KERNEL_OK")
</pallas_src>

<mosaic_0001>
module attributes {stable_mosaic.version = 11 : i64} {
  func.func @_conv3x3_kernel(%arg0: i32, %arg1: memref<1x198x4xbf16, #tpu.memory_space<vmem>>, %arg2: memref<36x128xbf16, #tpu.memory_space<vmem>>, %arg3: memref<1x128xf32, #tpu.memory_space<vmem>>, %arg4: memref<1x144x128xbf16, #tpu.memory_space<vmem>>) attributes {dimension_semantics = [#tpu.dimension_semantics<parallel>], iteration_bounds = array<i64: 4>, scalar_prefetch = 0 : i64, scratch_operands = 0 : i64, tpu.core_type = #tpu.core_type<tc>, window_params = [{transform_indices = @transform_0, window_bounds = array<i64: 1, 198, 4>}, {pipeline_mode = #tpu.pipeline_mode<synchronous>, transform_indices = @transform_1, window_bounds = array<i64: 36, 128>}, {pipeline_mode = #tpu.pipeline_mode<synchronous>, transform_indices = @transform_2, window_bounds = array<i64: 1, 128>}, {transform_indices = @transform_3, window_bounds = array<i64: 1, 144, 128>}]} {
    %c0 = arith.constant 0 : index
    %c0_0 = arith.constant 0 : index
    %c0_1 = arith.constant 0 : index
    %0 = vector.load %arg1[%c0, %c0_0, %c0_1] : memref<1x198x4xbf16, #tpu.memory_space<vmem>>, vector<1x144x4xbf16>
    %1 = vector.shape_cast %0 : vector<1x144x4xbf16> to vector<144x4xbf16>
    %c0_2 = arith.constant 0 : index
    %c0_3 = arith.constant 0 : index
    %2 = vector.load %arg2[%c0_2, %c0_3] : memref<36x128xbf16, #tpu.memory_space<vmem>>, vector<4x128xbf16>
    %cst = arith.constant dense<0.000000e+00> : vector<144x128xf32>
    %3 = tpu.matmul %1, %2, %cst {dimension_numbers = #tpu.dot_dimension_numbers<[1], [0], [0], [1], [0, 0, 1, 1], [], []>} : vector<144x4xbf16>, vector<4x128xbf16>, vector<144x128xf32> -> vector<144x128xf32>
    %c0_4 = arith.constant 0 : index
    %c1 = arith.constant 1 : index
    %c0_5 = arith.constant 0 : index
    %4 = vector.load %arg1[%c0_4, %c1, %c0_5] : memref<1x198x4xbf16, #tpu.memory_space<vmem>>, vector<1x144x4xbf16>
    %5 = vector.shape_cast %4 : vector<1x144x4xbf16> to vector<144x4xbf16>
    %c4 = arith.constant 4 : index
    %c0_6 = arith.constant 0 : index
    %6 = vector.load %arg2[%c4, %c0_6] : memref<36x128xbf16, #tpu.memory_space<vmem>>, vector<4x128xbf16>
    %cst_7 = arith.constant dense<0.000000e+00> : vector<144x128xf32>
    %7 = tpu.matmul %5, %6, %cst_7 {dimension_numbers = #tpu.dot_dimension_numbers<[1], [0], [0], [1], [0, 0, 1, 1], [], []>} : vector<144x4xbf16>, vector<4x128xbf16>, vector<144x128xf32> -> vector<144x128xf32>
    %8 = arith.addf %3, %7 : vector<144x128xf32>
    %c0_8 = arith.constant 0 : index
    %c2 = arith.constant 2 : index
    %c0_9 = arith.constant 0 : index
    %9 = vector.load %arg1[%c0_8, %c2, %c0_9] : memref<1x198x4xbf16, #tpu.memory_space<vmem>>, vector<1x144x4xbf16>
    %10 = vector.shape_cast %9 : vector<1x144x4xbf16> to vector<144x4xbf16>
    %c8 = arith.constant 8 : index
    %c0_10 = arith.constant 0 : index
    %11 = vector.load %arg2[%c8, %c0_10] : memref<36x128xbf16, #tpu.memory_space<vmem>>, vector<4x128xbf16>
    %cst_11 = arith.constant dense<0.000000e+00> : vector<144x128xf32>
    %12 = tpu.matmul %10, %11, %cst_11 {dimension_numbers = #tpu.dot_dimension_numbers<[1], [0], [0], [1], [0, 0, 1, 1], [], []>} : vector<144x4xbf16>, vector<4x128xbf16>, vector<144x128xf32> -> vector<144x128xf32>
    %13 = arith.addf %8, %12 : vector<144x128xf32>
    %c0_12 = arith.constant 0 : index
    %c18 = arith.constant 18 : index
    %c0_13 = arith.constant 0 : index
    %14 = vector.load %arg1[%c0_12, %c18, %c0_13] : memref<1x198x4xbf16, #tpu.memory_space<vmem>>, vector<1x144x4xbf16>
    %15 = vector.shape_cast %14 : vector<1x144x4xbf16> to vector<144x4xbf16>
    %c12 = arith.constant 12 : index
    %c0_14 = arith.constant 0 : index
    %16 = vector.load %arg2[%c12, %c0_14] : memref<36x128xbf16, #tpu.memory_space<vmem>>, vector<4x128xbf16>
    %cst_15 = arith.constant dense<0.000000e+00> : vector<144x128xf32>
    %17 = tpu.matmul %15, %16, %cst_15 {dimension_numbers = #tpu.dot_dimension_numbers<[1], [0], [0], [1], [0, 0, 1, 1], [], []>} : vector<144x4xbf16>, vector<4x128xbf16>, vector<144x128xf32> -> vector<144x128xf32>
    %18 = arith.addf %13, %17 : vector<144x128xf32>
    %c0_16 = arith.constant 0 : index
    %c19 = arith.constant 19 : index
    %c0_17 = arith.constant 0 : index
    %19 = vector.load %arg1[%c0_16, %c19, %c0_17] : memref<1x198x4xbf16, #tpu.memory_space<vmem>>, vector<1x144x4xbf16>
    %20 = vector.shape_cast %19 : vector<1x144x4xbf16> to vector<144x4xbf16>
    %c16 = arith.constant 16 : index
    %c0_18 = arith.constant 0 : index
    %21 = vector.load %arg2[%c16, %c0_18] : memref<36x128xbf16, #tpu.memory_space<vmem>>, vector<4x128xbf16>
    %cst_19 = arith.constant dense<0.000000e+00> : vector<144x128xf32>
    %22 = tpu.matmul %20, %21, %cst_19 {dimension_numbers = #tpu.dot_dimension_numbers<[1], [0], [0], [1], [0, 0, 1, 1], [], []>} : vector<144x4xbf16>, vector<4x128xbf16>, vector<144x128xf32> -> vector<144x128xf32>
    %23 = arith.addf %18, %22 : vector<144x128xf32>
    %c0_20 = arith.constant 0 : index
    %c20 = arith.constant 20 : index
    %c0_21 = arith.constant 0 : index
    %24 = vector.load %arg1[%c0_20, %c20, %c0_21] : memref<1x198x4xbf16, #tpu.memory_space<vmem>>, vector<1x144x4xbf16>
    %25 = vector.shape_cast %24 : vector<1x144x4xbf16> to vector<144x4xbf16>
    %c20_22 = arith.constant 20 : index
    %c0_23 = arith.constant 0 : index
    %26 = vector.load %arg2[%c20_22, %c0_23] : memref<36x128xbf16, #tpu.memory_space<vmem>>, vector<4x128xbf16>
    %cst_24 = arith.constant dense<0.000000e+00> : vector<144x128xf32>
    %27 = tpu.matmul %25, %26, %cst_24 {dimension_numbers = #tpu.dot_dimension_numbers<[1], [0], [0], [1], [0, 0, 1, 1], [], []>} : vector<144x4xbf16>, vector<4x128xbf16>, vector<144x128xf32> -> vector<144x128xf32>
    %28 = arith.addf %23, %27 : vector<144x128xf32>
    %c0_25 = arith.constant 0 : index
    %c36 = arith.constant 36 : index
    %c0_26 = arith.constant 0 : index
    %29 = vector.load %arg1[%c0_25, %c36, %c0_26] : memref<1x198x4xbf16, #tpu.memory_space<vmem>>, vector<1x144x4xbf16>
    %30 = vector.shape_cast %29 : vector<1x144x4xbf16> to vector<144x4xbf16>
    %c24 = arith.constant 24 : index
    %c0_27 = arith.constant 0 : index
    %31 = vector.load %arg2[%c24, %c0_27] : memref<36x128xbf16, #tpu.memory_space<vmem>>, vector<4x128xbf16>
    %cst_28 = arith.constant dense<0.000000e+00> : vector<144x128xf32>
    %32 = tpu.matmul %30, %31, %cst_28 {dimension_numbers = #tpu.dot_dimension_numbers<[1], [0], [0], [1], [0, 0, 1, 1], [], []>} : vector<144x4xbf16>, vector<4x128xbf16>, vector<144x128xf32> -> vector<144x128xf32>
    %33 = arith.addf %28, %32 : vector<144x128xf32>
    %c0_29 = arith.constant 0 : index
    %c37 = arith.constant 37 : index
    %c0_30 = arith.constant 0 : index
    %34 = vector.load %arg1[%c0_29, %c37, %c0_30] : memref<1x198x4xbf16, #tpu.memory_space<vmem>>, vector<1x144x4xbf16>
    %35 = vector.shape_cast %34 : vector<1x144x4xbf16> to vector<144x4xbf16>
    %c28 = arith.constant 28 : index
    %c0_31 = arith.constant 0 : index
    %36 = vector.load %arg2[%c28, %c0_31] : memref<36x128xbf16, #tpu.memory_space<vmem>>, vector<4x128xbf16>
    %cst_32 = arith.constant dense<0.000000e+00> : vector<144x128xf32>
    %37 = tpu.matmul %35, %36, %cst_32 {dimension_numbers = #tpu.dot_dimension_numbers<[1], [0], [0], [1], [0, 0, 1, 1], [], []>} : vector<144x4xbf16>, vector<4x128xbf16>, vector<144x128xf32> -> vector<144x128xf32>
    %38 = arith.addf %33, %37 : vector<144x128xf32>
    %c0_33 = arith.constant 0 : index
    %c38 = arith.constant 38 : index
    %c0_34 = arith.constant 0 : index
    %39 = vector.load %arg1[%c0_33, %c38, %c0_34] : memref<1x198x4xbf16, #tpu.memory_space<vmem>>, vector<1x144x4xbf16>
    %40 = vector.shape_cast %39 : vector<1x144x4xbf16> to vector<144x4xbf16>
    %c32 = arith.constant 32 : index
    %c0_35 = arith.constant 0 : index
    %41 = vector.load %arg2[%c32, %c0_35] : memref<36x128xbf16, #tpu.memory_space<vmem>>, vector<4x128xbf16>
    %cst_36 = arith.constant dense<0.000000e+00> : vector<144x128xf32>
    %42 = tpu.matmul %40, %41, %cst_36 {dimension_numbers = #tpu.dot_dimension_numbers<[1], [0], [0], [1], [0, 0, 1, 1], [], []>} : vector<144x4xbf16>, vector<4x128xbf16>, vector<144x128xf32> -> vector<144x128xf32>
    %43 = arith.addf %38, %42 : vector<144x128xf32>
    %c0_37 = arith.constant 0 : index
    %c0_38 = arith.constant 0 : index
    %44 = vector.load %arg3[%c0_37, %c0_38] : memref<1x128xf32, #tpu.memory_space<vmem>>, vector<1x128xf32>
    %45 = vector.broadcast %44 : vector<1x128xf32> to vector<144x128xf32>
    %46 = arith.addf %43, %45 : vector<144x128xf32>
    %47 = arith.truncf %46 : vector<144x128xf32> to vector<144x128xbf16>
    %c0_39 = arith.constant 0 : index
    %c0_40 = arith.constant 0 : index
    %c0_41 = arith.constant 0 : index
    %48 = vector.load %arg4[%c0_39, %c0_40, %c0_41] : memref<1x144x128xbf16, #tpu.memory_space<vmem>>, vector<1x144x128xbf16>
    %49 = vector.shape_cast %48 : vector<1x144x128xbf16> to vector<144x128xbf16>
    %50 = vector.shape_cast %47 : vector<144x128xbf16> to vector<1x144x128xbf16>
    tpu.vector_store %arg4[%c0_39, %c0_40, %c0_41], %50 {strides = array<i32>} : memref<1x144x128xbf16, #tpu.memory_space<vmem>>, vector<1x144x128xbf16>,
    return
  }
  func.func @transform_0(%arg0: i32) -> (i32, i32, i32) {
    %c0_i32 = arith.constant 0 : i32
    %c0_i32_0 = arith.constant 0 : i32
    %c0_i32_1 = arith.constant 0 : i32
    return %arg0, %c0_i32, %c0_i32_0 : i32, i32, i32
  }
  func.func @transform_1(%arg0: i32) -> (i32, i32) {
    %c0_i32 = arith.constant 0 : i32
    %c0_i32_0 = arith.constant 0 : i32
    %c0_i32_1 = arith.constant 0 : i32
    return %c0_i32, %c0_i32_0 : i32, i32
  }
  func.func @transform_2(%arg0: i32) -> (i32, i32) {
    %c0_i32 = arith.constant 0 : i32
    %c0_i32_0 = arith.constant 0 : i32
    %c0_i32_1 = arith.constant 0 : i32
    return %c0_i32, %c0_i32_0 : i32, i32
  }
  func.func @transform_3(%arg0: i32) -> (i32, i32, i32) {
    %c0_i32 = arith.constant 0 : i32
    %c0_i32_0 = arith.constant 0 : i32
    %c0_i32_1 = arith.constant 0 : i32
    return %arg0, %c0_i32, %c0_i32_0 : i32, i32, i32
  }
}

</mosaic_0001>

<llo_original>
// kernel: conv3x3.1
$region0: #{conv3x3.1}
  #allocation0 [shape = 'u32[]', space=smem, size = 0x4, offset = 0x4, fixed_abs, tag = 'smem constant byte address 0x4 - core index']
  #allocation1 [shape = 'u32[144,128]{1,0:T(1,128)}', space=vmem, size = 0x12000, scoped, tag = 'internal scratch']
  %s0 = inlined_call_operand.vmem [shape: bf16[4,198,4], index: 0, kind: input, shape index: {}]
  %s1 = inlined_call_operand.vmem [shape: bf16[36,128], index: 1, kind: input, shape index: {}]
  %s2 = inlined_call_operand.vmem [shape: f32[1,128], index: 2, kind: input, shape index: {}]
  %s3 = inlined_call_operand.vmem [shape: bf16[4,144,128], index: 3, kind: output, shape index: {}]
  %s4 = sld [smem:[#allocation0]]
  $region45: #{conv3x3.1} parent=0
    _
  %s6 = ssub.s32 1, %s4
  %s7 = scalar_select 0, %s6, %s4
  loop: start=0, step=1, limit=6
  $region2: #{conv3x3.1} parent=0 // loop_pre_header
    _
  $region3: #{conv3x3.1} parent=0 // loop_header
    %s9 = sphi 0, %s13
    %p10 = scmp.ge.s32.totalorder %s9, 6
    %s19 = sphi 0, %s21
    %s22 = sphi 0, %s19
    %s23 = sphi 0, %s22
    %s39 = sphi 0, %s23
    %s43 = sphi 0, %s43
    %s45 = sphi 0, %s43
    %s46 = sphi 0, %s45
    %s60 = sphi 0, %s46
    %s64 = sphi 0, %s64
    %s66 = sphi 0, %s64
    %s67 = sphi 0, %s66
    %s81 = sphi 0, %s67
    %s87 = sphi 0, %s89
    %s90 = sphi 0, %s87
    %s91 = sphi 0, %s90
    %s107 = sphi 0, %s91
  $region4: #{conv3x3.1} parent=0 // loop_header_branch
    %12 = sbr.rel (%p10) target = $region8
  $region5: #{conv3x3.1} parent=0 // loop_body
    %s14 = ssub.s32 %s9, 1
    %s15 = ssub.s32 %s9, 2
    %s16 = sadd.s32 %s9, 1
    %s17 = ssub.s32 %s9, %s16
    %p18 = scmp.eq.s32.totalorder %s17, 0
    %s20 = sadd.s32 %s19, 1
    %s21 = scalar_select %p18, %s19, %s20
    %p24 = pneg %p18
    %p25 = scmp.eq.s32.totalorder %s9, 3
    %p26 = por %p24, %p25
    %p27 = scmp.ne.s32.totalorder %s19, %s22
    %p28 = scmp.eq.s32.totalorder %s9, 0
    %p29 = por %p27, %p28
    %p30 = scmp.ne.s32.totalorder %s19, %s22
    %p31 = scmp.eq.s32.totalorder %s14, 3
    %p32 = por %p30, %p31
    %p33 = scmp.ne.s32.totalorder %s22, %s23
    %p34 = scmp.eq.s32.totalorder %s14, 0
    %p35 = por %p33, %p34
    %p36 = scmp.ne.s32.totalorder %s22, %s23
    %p37 = scmp.eq.s32.totalorder %s15, 3
    %p38 = por %p36, %p37
    %p40 = scmp.ne.s32.totalorder %s23, %s39
    %p41 = scmp.eq.s32.totalorder %s15, 0
    %p42 = por %p40, %p41
    %s44 = sadd.s32 %s43, 1
    %p47 = scmp.eq.s32.totalorder %s9, 3
    %p48 = scmp.ne.s32.totalorder %s43, %s45
    %p49 = scmp.eq.s32.totalorder %s9, 0
    %p50 = por %p48, %p49
    %p51 = scmp.ne.s32.totalorder %s43, %s45
    %p52 = scmp.eq.s32.totalorder %s14, 3
    %p53 = por %p51, %p52
    %p54 = scmp.ne.s32.totalorder %s45, %s46
    %p55 = scmp.eq.s32.totalorder %s14, 0
    %p56 = por %p54, %p55
    %p57 = scmp.ne.s32.totalorder %s45, %s46
    %p58 = scmp.eq.s32.totalorder %s15, 3
    %p59 = por %p57, %p58
    %p61 = scmp.ne.s32.totalorder %s46, %s60
    %p62 = scmp.eq.s32.totalorder %s15, 0
    %p63 = por %p61, %p62
    %s65 = sadd.s32 %s64, 1
    %p68 = scmp.eq.s32.totalorder %s9, 3
    %p69 = scmp.ne.s32.totalorder %s64, %s66
    %p70 = scmp.eq.s32.totalorder %s9, 0
    %p71 = por %p69, %p70
    %p72 = scmp.ne.s32.totalorder %s64, %s66
    %p73 = scmp.eq.s32.totalorder %s14, 3
    %p74 = por %p72, %p73
    %p75 = scmp.ne.s32.totalorder %s66, %s67
    %p76 = scmp.eq.s32.totalorder %s14, 0
    %p77 = por %p75, %p76
    %p78 = scmp.ne.s32.totalorder %s66, %s67
    %p79 = scmp.eq.s32.totalorder %s15, 3
    %p80 = por %p78, %p79
    %p82 = scmp.ne.s32.totalorder %s67, %s81
    %p83 = scmp.eq.s32.totalorder %s15, 0
    %p84 = por %p82, %p83
    %s85 = ssub.s32 %s9, %s16
    %p86 = scmp.eq.s32.totalorder %s85, 0
    %s88 = sadd.s32 %s87, 1
    %s89 = scalar_select %p86, %s87, %s88
    %p92 = pneg %p86
    %p93 = scmp.eq.s32.totalorder %s9, 3
    %p94 = por %p92, %p93
    %p95 = scmp.ne.s32.totalorder %s87, %s90
    %p96 = scmp.eq.s32.totalorder %s9, 0
    %p97 = por %p95, %p96
    %p98 = scmp.ne.s32.totalorder %s87, %s90
    %p99 = scmp.eq.s32.totalorder %s14, 3
    %p100 = por %p98, %p99
    %p101 = scmp.ne.s32.totalorder %s90, %s91
    %p102 = scmp.eq.s32.totalorder %s14, 0
    %p103 = por %p101, %p102
    %p104 = scmp.ne.s32.totalorder %s90, %s91
    %p105 = scmp.eq.s32.totalorder %s15, 3
    %p106 = por %p104, %p105
    %p108 = scmp.ne.s32.totalorder %s91, %s107
    %p109 = scmp.eq.s32.totalorder %s15, 0
    %p110 = por %p108, %p109
    %p111 = scmp.le.s32.totalorder 1, %s9
    %p112 = scmp.lt.s32.totalorder %s9, 5
    %p113 = pnand %p111, %p112
    %p114 = pneg %p113
    // Predicated region
    $region9: #{conv3x3.1} parent=5 // pred_check
      _
    $region10: #{conv3x3.1} parent=5 // pred_check_branch
      %116 = sbr.rel (%p113) target = $region12
    $region11: #{conv3x3.1} parent=5 // pred_region
      %s117 = ssub.s32 %s9, 1
      // Predicated region
      $region13: #{conv3x3.1} parent=11 // pred_check
        %p118 = pneg %p56
      $region14: #{conv3x3.1} parent=11 // pred_check_branch
        %120 = sbr.rel (%p118) target = $region16
      $region15: #{conv3x3.1} parent=11 // pred_region
        _
      $region16: #{conv3x3.1} parent=11 // pred_fallthru
        _
      // Predicated region
      $region17: #{conv3x3.1} parent=11 // pred_check
        %p121 = pneg %p77
      $region18: #{conv3x3.1} parent=11 // pred_check_branch
        %123 = sbr.rel (%p121) target = $region20
      $region19: #{conv3x3.1} parent=11 // pred_region
        _
      $region20: #{conv3x3.1} parent=11 // pred_fallthru
        _
    $region12: #{conv3x3.1} parent=5 // pred_fallthru
      _
    %p124 = scmp.lt.s32.totalorder %s9, 4
    // Predicated region
    $region21: #{conv3x3.1} parent=5 // pred_check
      %p125 = pneg %p124
    $region22: #{conv3x3.1} parent=5 // pred_check_branch
      %127 = sbr.rel (%p125) target = $region24
    $region23: #{conv3x3.1} parent=5 // pred_region
      // Predicated region
      $region25: #{conv3x3.1} parent=23 // pred_check
        %p128 = pneg %p29
      $region26: #{conv3x3.1} parent=23 // pred_check_branch
        %130 = sbr.rel (%p128) target = $region28
      $region27: #{conv3x3.1} parent=23 // pred_region
        %p131 = scmp.lt.s32.totalorder %s9, 3
        %s132 = scalar_select %p131, %s9, 3
        %s133 = smul.addr %s132, 25
        %s134 = smul.addr %s133, 4
        %s135 = scalar_lea.vmem %s0, %s134
      $region28: #{conv3x3.1} parent=23 // pred_fallthru
        _
    $region24: #{conv3x3.1} parent=5 // pred_fallthru
      _
    %p136 = scmp.le.s32.totalorder 1, %s9
    %p137 = scmp.lt.s32.totalorder %s9, 5
    %p138 = pnand %p136, %p137
    %p139 = pneg %p138
    // Predicated region
    $region29: #{conv3x3.1} parent=5 // pred_check
      _
    $region30: #{conv3x3.1} parent=5 // pred_check_branch
      %141 = sbr.rel (%p138) target = $region32
    $region31: #{conv3x3.1} parent=5 // pred_region
      %s142 = ssub.s32 %s9, 1
      %p143 = scmp.lt.s32.totalorder %s14, 3
      %s144 = scalar_select %p143, %s14, 3
      %s145 = smul.addr %s144, 25
      %s146 = smul.addr %s145, 4
      %s147 = scalar_lea.vmem %s0, %s146
      %p148 = pneg %p35
      %p149 = pneg %p32
      %p150 = pneg %p56
      %p151 = pneg %p53
      %p152 = pneg %p77
      %p153 = pneg %p74
      %p154 = pneg %p103
      %p155 = pneg %p100
      %p156 = scmp.lt.s32.totalorder %s14, 3
      %s157 = scalar_select %p156, %s14, 3
      %s158 = smul.addr %s157, 18
      %s159 = smul.addr %s158, 4
      %s160 = scalar_lea.vmem %s3, %s159
      %p161 = scmp.lt.s32.totalorder %s14, 3
      %s162 = scalar_select %p161, %s14, 3
      %s163 = smul.addr %s162, 25
      %s164 = smul.addr %s163, 4
      %s165 = scalar_lea.vmem %s0, %s164
      %p166 = scmp.lt.s32.totalorder %s14, 3
      %s167 = scalar_select %p166, %s14, 3
      %s168 = smul.addr %s167, 18
      %s169 = smul.addr %s168, 4
      %s170 = scalar_lea.vmem %s3, %s169
      %v172 = vld [vmem:[%s165] sm:$0xf]
      %v173 = vld [vmem:[%s165 + $0x4] sm:$0xf]
      %v174 = vld [vmem:[%s165 + $0x8] sm:$0xf]
      %v175 = vld [vmem:[%s165 + $0xc] sm:$0xf]
      %v176 = vld [vmem:[%s165 + $0x10] sm:$0xf]
      %v177 = vld [vmem:[%s165 + $0x14] sm:$0xf]
      %v178 = vld [vmem:[%s165 + $0x18] sm:$0xf]
      %v179 = vld [vmem:[%s165 + $0x1c] sm:$0xf]
      %v180 = vld [vmem:[%s165 + $0x20] sm:$0xf]
      %v181 = vld [vmem:[%s165 + $0x24] sm:$0xf]
      %v182 = vld [vmem:[%s165 + $0x28] sm:$0xf]
      %v183 = vld [vmem:[%s165 + $0x2c] sm:$0xf]
      %v184 = vld [vmem:[%s165 + $0x30] sm:$0xf]
      %v185 = vld [vmem:[%s165 + $0x34] sm:$0xf]
      %v186 = vld [vmem:[%s165 + $0x38] sm:$0xf]
      %v187 = vld [vmem:[%s165 + $0x3c] sm:$0xf]
      %v188 = vld [vmem:[%s165 + $0x40] sm:$0xf]
      %v189 = vld [vmem:[%s165 + $0x44] sm:$0xf]
      %v190 = vld [vmem:[%s1] sm:$0x3]
      %v191 = vld [vmem:[%s165 + $0x48] sm:$0x1]
      %v192 = vld [vmem:[%s1] sm:$0xc]
      %v212 = vunpack.c.l.b16 %v172
      %v213 = vunpack.c.l.b16 %v173
      %v214 = vunpack.c.l.b16 %v174
      %v215 = vunpack.c.l.b16 %v175
      %v216 = vunpack.c.l.b16 %v176
      %v217 = vunpack.c.l.b16 %v177
      %v218 = vunpack.c.l.b16 %v178
      %v219 = vunpack.c.l.b16 %v179
      %v220 = vunpack.c.l.b16 %v180
      %v221 = vunpack.c.l.b16 %v181
      %v222 = vunpack.c.l.b16 %v182
      %v223 = vunpack.c.l.b16 %v183
      %v224 = vunpack.c.l.b16 %v184
      %v225 = vunpack.c.l.b16 %v185
      %v226 = vunpack.c.l.b16 %v186
      %v227 = vunpack.c.l.b16 %v187
      %v228 = vunpack.c.l.b16 %v188
      %v229 = vunpack.c.l.b16 %v189
      %v230 = vunpack.c.l.b16 %v191
      %v231 = vpack.c.b16 %v213, %v212
      %v232 = vpack.c.b16 %v215, %v214
      %v233 = vpack.c.b16 %v217, %v216
      %v234 = vpack.c.b16 %v219, %v218
      %v235 = vpack.c.b16 %v221, %v220
      %v236 = vpack.c.b16 %v223, %v222
      %v237 = vpack.c.b16 %v225, %v224
      %v238 = vpack.c.b16 %v227, %v226
      %v239 = vpack.c.b16 %v229, %v228
      %v240 = vpack.c.b16 %v230, %v230
      %vm241 = vsmask.f32 7424
      %v243 = vshrl.u32 %v231, 16
      %v245 = vshll.u32 %v231, 16
      %v247 = vrot.slane %v245, 1
      %v248 = vor.u32 %v243, %v247
      %v250 = vshll.u32 %v232, 16
      %v252 = vrot.slane %v250, 1
      %v253 = vsel %vm241, %v248, %v252
      %v254 = vshrl.u32 %v232, 16
      %v256 = vor.u32 %v254, %v252
      %v258 = vshll.u32 %v233, 16
      %v260 = vrot.slane %v258, 1
      %v261 = vsel %vm241, %v256, %v260
      %v262 = vshrl.u32 %v233, 16
      %v264 = vor.u32 %v262, %v260
      %v266 = vshll.u32 %v234, 16
      %v268 = vrot.slane %v266, 1
      %v269 = vsel %vm241, %v264, %v268
      %v270 = vshrl.u32 %v234, 16
      %v272 = vor.u32 %v270, %v268
      %v274 = vshll.u32 %v235, 16
      %v276 = vrot.slane %v274, 1
      %v277 = vsel %vm241, %v272, %v276
      %v278 = vshrl.u32 %v235, 16
      %v280 = vor.u32 %v278, %v276
      %v282 = vshll.u32 %v236, 16
      %v284 = vrot.slane %v282, 1
      %v285 = vsel %vm241, %v280, %v284
      %v286 = vshrl.u32 %v236, 16
      %v288 = vor.u32 %v286, %v284
      %v290 = vshll.u32 %v237, 16
      %v292 = vrot.slane %v290, 1
      %v293 = vsel %vm241, %v288, %v292
      %v294 = vshrl.u32 %v237, 16
      %v296 = vor.u32 %v294, %v292
      %v298 = vshll.u32 %v238, 16
      %v300 = vrot.slane %v298, 1
      %v301 = vsel %vm241, %v296, %v300
      %v302 = vshrl.u32 %v238, 16
      %v304 = vor.u32 %v302, %v300
      %v306 = vshll.u32 %v239, 16
      %v308 = vrot.slane %v306, 1
      %v309 = vsel %vm241, %v304, %v308
      %v310 = vshrl.u32 %v239, 16
      %v312 = vor.u32 %v310, %v308
      %v314 = vshll.u32 %v240, 16
      %v316 = vrot.slane %v314, 1
      %v317 = vsel %vm241, %v312, %v316
      %v319 = vunpack.c.l.b16 %v192
      %v320 = vpack.c.b16 %v319, %v319
      %v321 = vrot.slane %v320, 2
      %vm322 = vcmask 31744
      %v324 = vsel %vm322, %v253, 0
      %v327 = vsel %vm322, %v261, 0
      %v330 = vsel %vm322, %v269, 0
      %v333 = vsel %vm322, %v277, 0
      %v336 = vsel %vm322, %v285, 0
      %v339 = vsel %vm322, %v293, 0
      %v342 = vsel %vm322, %v301, 0
      %v345 = vsel %vm322, %v309, 0
      %v348 = vsel %vm322, %v317, 0
      %vm350 = vcmask 1041408
      %v352 = vsel %vm350, %v321, 0
      %354 = vmatprep.subr.bf16.mxu0 0
      %355 = vmatpush1.bf16.msra.mxu0 0
      %356 = vmatprep.subr.bf16.mxu0 0
      %357 = vmatpush1.bf16.msra.mxu0 0
      %358 = vmatprep.subr.bf16.mxu0 0
      %359 = vmatpush1.bf16.msra.mxu0 0
      %360 = vmatprep.subr.bf16.mxu0 0
      %361 = vmatpush1.bf16.msra.mxu0 0
      %362 = vmatprep.subr.bf16.mxu0 0
      %363 = vmatpush1.bf16.msra.mxu0 0
      %364 = vmatprep.subr.bf16.mxu0 0
      %365 = vmatpush1.bf16.msra.mxu0 0
      %366 = vmatprep.subr.bf16.mxu0 0
      %367 = vmatpush1.bf16.msra.mxu0 0
      %368 = vmatprep.subr.bf16.mxu0 0
      %369 = vmatpush1.bf16.msra.mxu0 %v352
      %370 = vmatprep.subr.bf16.mxu0 0
      %371 = vmatpush2.bf16.msra.mxu0 0
      %372 = vmatprep.subr.bf16.mxu0 0
      %373 = vmatpush2.bf16.msra.mxu0 0
      %374 = vmatprep.subr.bf16.mxu0 0
      %375 = vmatpush2.bf16.msra.mxu0 0
      %376 = vmatprep.subr.bf16.mxu0 0
      %377 = vmatpush2.bf16.msra.mxu0 0
      %378 = vmatprep.subr.bf16.mxu0 0
      %379 = vmatpush2.bf16.msra.mxu0 0
      %380 = vmatprep.subr.bf16.mxu0 0
      %381 = vmatpush2.bf16.msra.mxu0 0
      %382 = vmatprep.subr.bf16.mxu0 0
      %383 = vmatpush2.bf16.msra.mxu0 0
      %384 = vmatprep.subr.bf16.mxu0 0
      %385 = vmatpush2.bf16.msra.mxu0 0
      %386 = vmatprep.mubr.bf16.mxu0 0
      %387 = vmatmul.mubr.bf16.gmra.mxu0 %v324
      %v388 = vpop.f32.mrf.mxu0
      %v389 = vadd.f32 0.0, %v388
      %v390 = vpop.f32.mrf.mxu0
      %v391 = vpop.f32.mrf.mxu0
      %v392 = vadd.f32 0.0, %v391
      %v393 = vpop.f32.mrf.mxu0
      %394 = vmatprep.mubr.bf16.mxu0 0
      %395 = vmatmul.mubr.bf16.gmra.mxu0 %v327
      %v396 = vpop.f32.mrf.mxu0
      %v397 = vadd.f32 0.0, %v396
      %v398 = vpop.f32.mrf.mxu0
      %v399 = vpop.f32.mrf.mxu0
      %v400 = vadd.f32 0.0, %v399
      %v401 = vpop.f32.mrf.mxu0
      %402 = vmatprep.mubr.bf16.mxu0 0
      %403 = vmatmul.mubr.bf16.gmra.mxu0 %v330
      %v404 = vpop.f32.mrf.mxu0
      %v405 = vadd.f32 0.0, %v404
      %v406 = vpop.f32.mrf.mxu0
      %v407 = vpop.f32.mrf.mxu0
      %v408 = vadd.f32 0.0, %v407
      %v409 = vpop.f32.mrf.mxu0
      %410 = vmatprep.mubr.bf16.mxu0 0
      %411 = vmatmul.mubr.bf16.gmra.mxu0 %v333
      %v412 = vpop.f32.mrf.mxu0
      %v413 = vadd.f32 0.0, %v412
      %v414 = vpop.f32.mrf.mxu0
      %v415 = vpop.f32.mrf.mxu0
      %v416 = vadd.f32 0.0, %v415
      %v417 = vpop.f32.mrf.mxu0
      %418 = vmatprep.mubr.bf16.mxu0 0
      %419 = vmatmul.mubr.bf16.gmra.mxu0 %v336
      %v420 = vpop.f32.mrf.mxu0
      %v421 = vadd.f32 0.0, %v420
      %v422 = vpop.f32.mrf.mxu0
      %v423 = vpop.f32.mrf.mxu0
      %v424 = vadd.f32 0.0, %v423
      %v425 = vpop.f32.mrf.mxu0
      %426 = vmatprep.mubr.bf16.mxu0 0
      %427 = vmatmul.mubr.bf16.gmra.mxu0 %v339
      %v428 = vpop.f32.mrf.mxu0
      %v429 = vadd.f32 0.0, %v428
      %v430 = vpop.f32.mrf.mxu0
      %v431 = vpop.f32.mrf.mxu0
      %v432 = vadd.f32 0.0, %v431
      %v433 = vpop.f32.mrf.mxu0
      %434 = vmatprep.mubr.bf16.mxu0 0
      %435 = vmatmul.mubr.bf16.gmra.mxu0 %v342
      %v436 = vpop.f32.mrf.mxu0
      %v437 = vadd.f32 0.0, %v436
      %v438 = vpop.f32.mrf.mxu0
      %v439 = vpop.f32.mrf.mxu0
      %v440 = vadd.f32 0.0, %v439
      %v441 = vpop.f32.mrf.mxu0
      %442 = vmatprep.mubr.bf16.mxu0 0
      %443 = vmatmul.mubr.bf16.gmra.mxu0 %v345
      %v444 = vpop.f32.mrf.mxu0
      %v445 = vadd.f32 0.0, %v444
      %v446 = vpop.f32.mrf.mxu0
      %v447 = vpop.f32.mrf.mxu0
      %v448 = vadd.f32 0.0, %v447
      %v449 = vpop.f32.mrf.mxu0
      %450 = vmatprep.mubr.bf16.mxu0 0
      %451 = vmatmul.mubr.bf16.gmra.mxu0 %v348
      %v452 = vpop.f32.mrf.mxu0
      %v453 = vadd.f32 0.0, %v452
      %v454 = vpop.f32.mrf.mxu0
      %v455 = vpop.f32.mrf.mxu0
      %v456 = vadd.f32 0.0, %v455
      %v457 = vpop.f32.mrf.mxu0
      %458 = vdwg.mxu0
      %v459 = vsel %vm322, %v231, 0
      %v461 = vsel %vm322, %v232, 0
      %v463 = vsel %vm322, %v233, 0
      %v465 = vsel %vm322, %v234, 0
      %v467 = vsel %vm322, %v235, 0
      %v469 = vsel %vm322, %v236, 0
      %v471 = vsel %vm322, %v237, 0
      %v473 = vsel %vm322, %v238, 0
      %v475 = vsel %vm322, %v239, 0
      %v478 = vsel %vm350, %v190, 0
      %480 = vmatprep.subr.bf16.mxu0 0
      %481 = vmatpush1.bf16.msra.mxu0 0
      %482 = vmatprep.subr.bf16.mxu0 0
      %483 = vmatpush1.bf16.msra.mxu0 0
      %484 = vmatprep.subr.bf16.mxu0 0
      %485 = vmatpush1.bf16.msra.mxu0 0
      %486 = vmatprep.subr.bf16.mxu0 0
      %487 = vmatpush1.bf16.msra.mxu0 0
      %488 = vmatprep.subr.bf16.mxu0 0
      %489 = vmatpush1.bf16.msra.mxu0 0
      %490 = vmatprep.subr.bf16.mxu0 0
      %491 = vmatpush1.bf16.msra.mxu0 0
      %492 = vmatprep.subr.bf16.mxu0 0
      %493 = vmatpush1.bf16.msra.mxu0 0
      %494 = vmatprep.subr.bf16.mxu0 0
      %495 = vmatpush1.bf16.msra.mxu0 %v478
      %496 = vmatprep.subr.bf16.mxu0 0
      %497 = vmatpush2.bf16.msra.mxu0 0
      %498 = vmatprep.subr.bf16.mxu0 0
      %499 = vmatpush2.bf16.msra.mxu0 0
      %500 = vmatprep.subr.bf16.mxu0 0
      %501 = vmatpush2.bf16.msra.mxu0 0
      %502 = vmatprep.subr.bf16.mxu0 0
      %503 = vmatpush2.bf16.msra.mxu0 0
      %504 = vmatprep.subr.bf16.mxu0 0
      %505 = vmatpush2.bf16.msra.mxu0 0
      %506 = vmatprep.subr.bf16.mxu0 0
      %507 = vmatpush2.bf16.msra.mxu0 0
      %508 = vmatprep.subr.bf16.mxu0 0
      %509 = vmatpush2.bf16.msra.mxu0 0
      %510 = vmatprep.subr.bf16.mxu0 0
      %511 = vmatpush2.bf16.msra.mxu0 0
      %512 = vmatprep.mubr.bf16.mxu0 0
      %513 = vmatmul.mubr.bf16.gmra.mxu0 %v459
      %v514 = vpop.f32.mrf.mxu0
      %v515 = vadd.f32 %v389, %v514
      %v516 = vpop.f32.mrf.mxu0
      %v517 = vpop.f32.mrf.mxu0
      %v518 = vadd.f32 %v392, %v517
      %v519 = vpop.f32.mrf.mxu0
      %520 = vmatprep.mubr.bf16.mxu0 0
      %521 = vmatmul.mubr.bf16.gmra.mxu0 %v461
      %v522 = vpop.f32.mrf.mxu0
      %v523 = vadd.f32 %v397, %v522
      %v524 = vpop.f32.mrf.mxu0
      %v525 = vpop.f32.mrf.mxu0
      %v526 = vadd.f32 %v400, %v525
      %v527 = vpop.f32.mrf.mxu0
      %528 = vmatprep.mubr.bf16.mxu0 0
      %529 = vmatmul.mubr.bf16.gmra.mxu0 %v463
      %v530 = vpop.f32.mrf.mxu0
      %v531 = vadd.f32 %v405, %v530
      %v532 = vpop.f32.mrf.mxu0
      %v533 = vpop.f32.mrf.mxu0
      %v534 = vadd.f32 %v408, %v533
      %v535 = vpop.f32.mrf.mxu0
      %536 = vmatprep.mubr.bf16.mxu0 0
      %537 = vmatmul.mubr.bf16.gmra.mxu0 %v465
      %v538 = vpop.f32.mrf.mxu0
      %v539 = vadd.f32 %v413, %v538
      %v540 = vpop.f32.mrf.mxu0
      %v541 = vpop.f32.mrf.mxu0
      %v542 = vadd.f32 %v416, %v541
      %v543 = vpop.f32.mrf.mxu0
      %544 = vmatprep.mubr.bf16.mxu0 0
      %545 = vmatmul.mubr.bf16.gmra.mxu0 %v467
      %v546 = vpop.f32.mrf.mxu0
      %v547 = vadd.f32 %v421, %v546
      %v548 = vpop.f32.mrf.mxu0
      %v549 = vpop.f32.mrf.mxu0
      %v550 = vadd.f32 %v424, %v549
      %v551 = vpop.f32.mrf.mxu0
      %552 = vmatprep.mubr.bf16.mxu0 0
      %553 = vmatmul.mubr.bf16.gmra.mxu0 %v469
      %v554 = vpop.f32.mrf.mxu0
      %v555 = vadd.f32 %v429, %v554
      %v556 = vpop.f32.mrf.mxu0
      %v557 = vpop.f32.mrf.mxu0
      %v558 = vadd.f32 %v432, %v557
      %v559 = vpop.f32.mrf.mxu0
      %560 = vmatprep.mubr.bf16.mxu0 0
      %561 = vmatmul.mubr.bf16.gmra.mxu0 %v471
      %v562 = vpop.f32.mrf.mxu0
      %v563 = vadd.f32 %v437, %v562
      %v564 = vpop.f32.mrf.mxu0
      %v565 = vpop.f32.mrf.mxu0
      %v566 = vadd.f32 %v440, %v565
      %v567 = vpop.f32.mrf.mxu0
      %568 = vmatprep.mubr.bf16.mxu0 0
      %569 = vmatmul.mubr.bf16.gmra.mxu0 %v473
      %v570 = vpop.f32.mrf.mxu0
      %v571 = vadd.f32 %v445, %v570
      %v572 = vpop.f32.mrf.mxu0
      %v573 = vpop.f32.mrf.mxu0
      %v574 = vadd.f32 %v448, %v573
      %v575 = vpop.f32.mrf.mxu0
      %576 = vmatprep.mubr.bf16.mxu0 0
      %577 = vmatmul.mubr.bf16.gmra.mxu0 %v475
      %v578 = vpop.f32.mrf.mxu0
      %v579 = vadd.f32 %v453, %v578
      %v580 = vpop.f32.mrf.mxu0
      %v581 = vpop.f32.mrf.mxu0
      %v582 = vadd.f32 %v456, %v581
      %v583 = vpop.f32.mrf.mxu0
      %584 = vdwg.mxu0
      %v585 = vld [vmem:[%s165] sm:$0xe]
      %v586 = vld [vmem:[%s1 + $0x4] sm:$0x3]
      %v588 = vunpack.c.l.b16 %v585
      %v589 = vpack.c.b16 %v213, %v588
      %vm590 = vcmask 1046528
      %v591 = vrot.slane %v589, 1
      %v592 = vrot.slane %v232, 1
      %v593 = vsel %vm590, %v591, %v592
      %v594 = vrot.slane %v233, 1
      %v595 = vsel %vm590, %v592, %v594
      %v596 = vrot.slane %v234, 1
      %v597 = vsel %vm590, %v594, %v596
      %v598 = vrot.slane %v235, 1
      %v599 = vsel %vm590, %v596, %v598
      %v600 = vrot.slane %v236, 1
      %v601 = vsel %vm590, %v598, %v600
      %v602 = vrot.slane %v237, 1
      %v603 = vsel %vm590, %v600, %v602
      %v604 = vrot.slane %v238, 1
      %v605 = vsel %vm590, %v602, %v604
      %v606 = vrot.slane %v239, 1
      %v607 = vsel %vm590, %v604, %v606
      %v608 = vrot.slane %v240, 1
      %v609 = vsel %vm590, %v606, %v608
      %v611 = vsel %vm322, %v593, 0
      %v614 = vsel %vm322, %v595, 0
      %v617 = vsel %vm322, %v597, 0
      %v620 = vsel %vm322, %v599, 0
      %v623 = vsel %vm322, %v601, 0
      %v626 = vsel %vm322, %v603, 0
      %v629 = vsel %vm322, %v605, 0
      %v632 = vsel %vm322, %v607, 0
      %v635 = vsel %vm322, %v609, 0
      %v638 = vsel %vm350, %v586, 0
      %640 = vmatprep.subr.bf16.mxu0 0
      %641 = vmatpush1.bf16.msra.mxu0 0
      %642 = vmatprep.subr.bf16.mxu0 0
      %643 = vmatpush1.bf16.msra.mxu0 0
      %644 = vmatprep.subr.bf16.mxu0 0
      %645 = vmatpush1.bf16.msra.mxu0 0
      %646 = vmatprep.subr.bf16.mxu0 0
      %647 = vmatpush1.bf16.msra.mxu0 0
      %648 = vmatprep.subr.bf16.mxu0 0
      %649 = vmatpush1.bf16.msra.mxu0 0
      %650 = vmatprep.subr.bf16.mxu0 0
      %651 = vmatpush1.bf16.msra.mxu0 0
      %652 = vmatprep.subr.bf16.mxu0 0
      %653 = vmatpush1.bf16.msra.mxu0 0
      %654 = vmatprep.subr.bf16.mxu0 0
      %655 = vmatpush1.bf16.msra.mxu0 %v638
      %656 = vmatprep.subr.bf16.mxu0 0
      %657 = vmatpush2.bf16.msra.mxu0 0
      %658 = vmatprep.subr.bf16.mxu0 0
      %659 = vmatpush2.bf16.msra.mxu0 0
      %660 = vmatprep.subr.bf16.mxu0 0
      %661 = vmatpush2.bf16.msra.mxu0 0
      %662 = vmatprep.subr.bf16.mxu0 0
      %663 = vmatpush2.bf16.msra.mxu0 0
      %664 = vmatprep.subr.bf16.mxu0 0
      %665 = vmatpush2.bf16.msra.mxu0 0
      %666 = vmatprep.subr.bf16.mxu0 0
      %667 = vmatpush2.bf16.msra.mxu0 0
      %668 = vmatprep.subr.bf16.mxu0 0
      %669 = vmatpush2.bf16.msra.mxu0 0
      %670 = vmatprep.subr.bf16.mxu0 0
      %671 = vmatpush2.bf16.msra.mxu0 0
      %672 = vmatprep.mubr.bf16.mxu0 0
      %673 = vmatmul.mubr.bf16.gmra.mxu0 %v611
      %v674 = vpop.f32.mrf.mxu0
      %v675 = vadd.f32 0.0, %v674
      %v676 = vpop.f32.mrf.mxu0
      %v677 = vpop.f32.mrf.mxu0
      %v678 = vadd.f32 0.0, %v677
      %v679 = vpop.f32.mrf.mxu0
      %680 = vmatprep.mubr.bf16.mxu0 0
      %681 = vmatmul.mubr.bf16.gmra.mxu0 %v614
      %v682 = vpop.f32.mrf.mxu0
      %v683 = vadd.f32 0.0, %v682
      %v684 = vpop.f32.mrf.mxu0
      %v685 = vpop.f32.mrf.mxu0
      %v686 = vadd.f32 0.0, %v685
      %v687 = vpop.f32.mrf.mxu0
      %688 = vmatprep.mubr.bf16.mxu0 0
      %689 = vmatmul.mubr.bf16.gmra.mxu0 %v617
      %v690 = vpop.f32.mrf.mxu0
      %v691 = vadd.f32 0.0, %v690
      %v692 = vpop.f32.mrf.mxu0
      %v693 = vpop.f32.mrf.mxu0
      %v694 = vadd.f32 0.0, %v693
      %v695 = vpop.f32.mrf.mxu0
      %696 = vmatprep.mubr.bf16.mxu0 0
      %697 = vmatmul.mubr.bf16.gmra.mxu0 %v620
      %v698 = vpop.f32.mrf.mxu0
      %v699 = vadd.f32 0.0, %v698
      %v700 = vpop.f32.mrf.mxu0
      %v701 = vpop.f32.mrf.mxu0
      %v702 = vadd.f32 0.0, %v701
      %v703 = vpop.f32.mrf.mxu0
      %704 = vmatprep.mubr.bf16.mxu0 0
      %705 = vmatmul.mubr.bf16.gmra.mxu0 %v623
      %v706 = vpop.f32.mrf.mxu0
      %v707 = vadd.f32 0.0, %v706
      %v708 = vpop.f32.mrf.mxu0
      %v709 = vpop.f32.mrf.mxu0
      %v710 = vadd.f32 0.0, %v709
      %v711 = vpop.f32.mrf.mxu0
      %712 = vmatprep.mubr.bf16.mxu0 0
      %713 = vmatmul.mubr.bf16.gmra.mxu0 %v626
      %v714 = vpop.f32.mrf.mxu0
      %v715 = vadd.f32 0.0, %v714
      %v716 = vpop.f32.mrf.mxu0
      %v717 = vpop.f32.mrf.mxu0
      %v718 = vadd.f32 0.0, %v717
      %v719 = vpop.f32.mrf.mxu0
      %720 = vmatprep.mubr.bf16.mxu0 0
      %721 = vmatmul.mubr.bf16.gmra.mxu0 %v629
      %v722 = vpop.f32.mrf.mxu0
      %v723 = vadd.f32 0.0, %v722
      %v724 = vpop.f32.mrf.mxu0
      %v725 = vpop.f32.mrf.mxu0
      %v726 = vadd.f32 0.0, %v725
      %v727 = vpop.f32.mrf.mxu0
      %728 = vmatprep.mubr.bf16.mxu0 0
      %729 = vmatmul.mubr.bf16.gmra.mxu0 %v632
      %v730 = vpop.f32.mrf.mxu0
      %v731 = vadd.f32 0.0, %v730
      %v732 = vpop.f32.mrf.mxu0
      %v733 = vpop.f32.mrf.mxu0
      %v734 = vadd.f32 0.0, %v733
      %v735 = vpop.f32.mrf.mxu0
      %736 = vmatprep.mubr.bf16.mxu0 0
      %737 = vmatmul.mubr.bf16.gmra.mxu0 %v635
      %v738 = vpop.f32.mrf.mxu0
      %v739 = vadd.f32 0.0, %v738
      %v740 = vpop.f32.mrf.mxu0
      %v741 = vpop.f32.mrf.mxu0
      %v742 = vadd.f32 0.0, %v741
      %v743 = vpop.f32.mrf.mxu0
      %744 = vdwg.mxu0
      %v745 = vadd.f32 %v515, %v675
      %v746 = vadd.f32 %v518, %v678
      %v747 = vadd.f32 %v523, %v683
      %v748 = vadd.f32 %v526, %v686
      %v749 = vadd.f32 %v531, %v691
      %v750 = vadd.f32 %v534, %v694
      %v751 = vadd.f32 %v539, %v699
      %v752 = vadd.f32 %v542, %v702
      %v753 = vadd.f32 %v547, %v707
      %v754 = vadd.f32 %v550, %v710
      %v755 = vadd.f32 %v555, %v715
      %v756 = vadd.f32 %v558, %v718
      %v757 = vadd.f32 %v563, %v723
      %v758 = vadd.f32 %v566, %v726
      %v759 = vadd.f32 %v571, %v731
      %v760 = vadd.f32 %v574, %v734
      %v761 = vadd.f32 %v579, %v739
      %v762 = vadd.f32 %v582, %v742
      %v763 = vld [vmem:[%s165 + $0x8] sm:$0xe]
      %v764 = vld [vmem:[%s165 + $0xc] sm:$0xf]
      %v765 = vld [vmem:[%s165 + $0x10] sm:$0xf]
      %v766 = vld [vmem:[%s165 + $0x14] sm:$0xf]
      %v767 = vld [vmem:[%s165 + $0x18] sm:$0xf]
      %v768 = vld [vmem:[%s165 + $0x1c] sm:$0xf]
      %v769 = vld [vmem:[%s165 + $0x20] sm:$0xf]
      %v770 = vld [vmem:[%s165 + $0x24] sm:$0xf]
      %v771 = vld [vmem:[%s165 + $0x28] sm:$0xf]
      %v772 = vld [vmem:[%s165 + $0x2c] sm:$0xf]
      %v773 = vld [vmem:[%s165 + $0x30] sm:$0xf]
      %v774 = vld [vmem:[%s165 + $0x34] sm:$0xf]
      %v775 = vld [vmem:[%s165 + $0x38] sm:$0xf]
      %v776 = vld [vmem:[%s165 + $0x3c] sm:$0xf]
      %v777 = vld [vmem:[%s165 + $0x40] sm:$0xf]
      %v778 = vld [vmem:[%s165 + $0x44] sm:$0xf]
      %v779 = vld [vmem:[%s165 + $0x48] sm:$0xf]
      %v780 = vld [vmem:[%s165 + $0x4c] sm:$0xf]
      %v781 = vld [vmem:[%s165 + $0x50] sm:$0x1]
      %v782 = vld [vmem:[%s1 + $0x4] sm:$0xc]
      %v802 = vunpack.c.l.b16 %v763
      %v803 = vunpack.c.l.b16 %v764
      %v804 = vunpack.c.l.b16 %v765
      %v805 = vunpack.c.l.b16 %v766
      %v806 = vunpack.c.l.b16 %v767
      %v807 = vunpack.c.l.b16 %v768
      %v808 = vunpack.c.l.b16 %v769
      %v809 = vunpack.c.l.b16 %v770
      %v810 = vunpack.c.l.b16 %v771
      %v811 = vunpack.c.l.b16 %v772
      %v812 = vunpack.c.l.b16 %v773
      %v813 = vunpack.c.l.b16 %v774
      %v814 = vunpack.c.l.b16 %v775
      %v815 = vunpack.c.l.b16 %v776
      %v816 = vunpack.c.l.b16 %v777
      %v817 = vunpack.c.l.b16 %v778
      %v818 = vunpack.c.l.b16 %v779
      %v819 = vunpack.c.l.b16 %v780
      %v820 = vunpack.c.l.b16 %v781
      %v821 = vpack.c.b16 %v803, %v802
      %v822 = vpack.c.b16 %v805, %v804
      %v823 = vpack.c.b16 %v807, %v806
      %v824 = vpack.c.b16 %v809, %v808
      %v825 = vpack.c.b16 %v811, %v810
      %v826 = vpack.c.b16 %v813, %v812
      %v827 = vpack.c.b16 %v815, %v814
      %v828 = vpack.c.b16 %v817, %v816
      %v829 = vpack.c.b16 %v819, %v818
      %v830 = vpack.c.b16 %v820, %v820
      %v831 = vrot.slane %v821, 1
      %v832 = vrot.slane %v822, 1
      %v833 = vsel %vm590, %v831, %v832
      %v834 = vrot.slane %v823, 1
      %v835 = vsel %vm590, %v832, %v834
      %v836 = vrot.slane %v824, 1
      %v837 = vsel %vm590, %v834, %v836
      %v838 = vrot.slane %v825, 1
      %v839 = vsel %vm590, %v836, %v838
      %v840 = vrot.slane %v826, 1
      %v841 = vsel %vm590, %v838, %v840
      %v842 = vrot.slane %v827, 1
      %v843 = vsel %vm590, %v840, %v842
      %v844 = vrot.slane %v828, 1
      %v845 = vsel %vm590, %v842, %v844
      %v846 = vrot.slane %v829, 1
      %v847 = vsel %vm590, %v844, %v846
      %v848 = vrot.slane %v830, 1
      %v849 = vsel %vm590, %v846, %v848
      %v851 = vunpack.c.l.b16 %v782
      %v852 = vpack.c.b16 %v851, %v851
      %v853 = vrot.slane %v852, 2
      %v855 = vsel %vm322, %v833, 0
      %v858 = vsel %vm322, %v835, 0
      %v861 = vsel %vm322, %v837, 0
      %v864 = vsel %vm322, %v839, 0
      %v867 = vsel %vm322, %v841, 0
      %v870 = vsel %vm322, %v843, 0
      %v873 = vsel %vm322, %v845, 0
      %v876 = vsel %vm322, %v847, 0
      %v879 = vsel %vm322, %v849, 0
      %v882 = vsel %vm350, %v853, 0
      %884 = vmatprep.subr.bf16.mxu0 0
      %885 = vmatpush1.bf16.msra.mxu0 0
      %886 = vmatprep.subr.bf16.mxu0 0
      %887 = vmatpush1.bf16.msra.mxu0 0
      %888 = vmatprep.subr.bf16.mxu0 0
      %889 = vmatpush1.bf16.msra.mxu0 0
      %890 = vmatprep.subr.bf16.mxu0 0
      %891 = vmatpush1.bf16.msra.mxu0 0
      %892 = vmatprep.subr.bf16.mxu0 0
      %893 = vmatpush1.bf16.msra.mxu0 0
      %894 = vmatprep.subr.bf16.mxu0 0
      %895 = vmatpush1.bf16.msra.mxu0 0
      %896 = vmatprep.subr.bf16.mxu0 0
      %897 = vmatpush1.bf16.msra.mxu0 0
      %898 = vmatprep.subr.bf16.mxu0 0
      %899 = vmatpush1.bf16.msra.mxu0 %v882
      %900 = vmatprep.subr.bf16.mxu0 0
      %901 = vmatpush2.bf16.msra.mxu0 0
      %902 = vmatprep.subr.bf16.mxu0 0
      %903 = vmatpush2.bf16.msra.mxu0 0
      %904 = vmatprep.subr.bf16.mxu0 0
      %905 = vmatpush2.bf16.msra.mxu0 0
      %906 = vmatprep.subr.bf16.mxu0 0
      %907 = vmatpush2.bf16.msra.mxu0 0
      %908 = vmatprep.subr.bf16.mxu0 0
      %909 = vmatpush2.bf16.msra.mxu0 0
      %910 = vmatprep.subr.bf16.mxu0 0
      %911 = vmatpush2.bf16.msra.mxu0 0
      %912 = vmatprep.subr.bf16.mxu0 0
      %913 = vmatpush2.bf16.msra.mxu0 0
      %914 = vmatprep.subr.bf16.mxu0 0
      %915 = vmatpush2.bf16.msra.mxu0 0
      %916 = vmatprep.mubr.bf16.mxu0 0
      %917 = vmatmul.mubr.bf16.gmra.mxu0 %v855
      %v918 = vpop.f32.mrf.mxu0
      %v919 = vadd.f32 0.0, %v918
      %v920 = vpop.f32.mrf.mxu0
      %v921 = vpop.f32.mrf.mxu0
      %v922 = vadd.f32 0.0, %v921
      %v923 = vpop.f32.mrf.mxu0
      %924 = vmatprep.mubr.bf16.mxu0 0
      %925 = vmatmul.mubr.bf16.gmra.mxu0 %v858
      %v926 = vpop.f32.mrf.mxu0
      %v927 = vadd.f32 0.0, %v926
      %v928 = vpop.f32.mrf.mxu0
      %v929 = vpop.f32.mrf.mxu0
      %v930 = vadd.f32 0.0, %v929
      %v931 = vpop.f32.mrf.mxu0
      %932 = vmatprep.mubr.bf16.mxu0 0
      %933 = vmatmul.mubr.bf16.gmra.mxu0 %v861
      %v934 = vpop.f32.mrf.mxu0
      %v935 = vadd.f32 0.0, %v934
      %v936 = vpop.f32.mrf.mxu0
      %v937 = vpop.f32.mrf.mxu0
      %v938 = vadd.f32 0.0, %v937
      %v939 = vpop.f32.mrf.mxu0
      %940 = vmatprep.mubr.bf16.mxu0 0
      %941 = vmatmul.mubr.bf16.gmra.mxu0 %v864
      %v942 = vpop.f32.mrf.mxu0
      %v943 = vadd.f32 0.0, %v942
      %v944 = vpop.f32.mrf.mxu0
      %v945 = vpop.f32.mrf.mxu0
      %v946 = vadd.f32 0.0, %v945
      %v947 = vpop.f32.mrf.mxu0
      %948 = vmatprep.mubr.bf16.mxu0 0
      %949 = vmatmul.mubr.bf16.gmra.mxu0 %v867
      %v950 = vpop.f32.mrf.mxu0
      %v951 = vadd.f32 0.0, %v950
      %v952 = vpop.f32.mrf.mxu0
      %v953 = vpop.f32.mrf.mxu0
      %v954 = vadd.f32 0.0, %v953
      %v955 = vpop.f32.mrf.mxu0
      %956 = vmatprep.mubr.bf16.mxu0 0
      %957 = vmatmul.mubr.bf16.gmra.mxu0 %v870
      %v958 = vpop.f32.mrf.mxu0
      %v959 = vadd.f32 0.0, %v958
      %v960 = vpop.f32.mrf.mxu0
      %v961 = vpop.f32.mrf.mxu0
      %v962 = vadd.f32 0.0, %v961
      %v963 = vpop.f32.mrf.mxu0
      %964 = vmatprep.mubr.bf16.mxu0 0
      %965 = vmatmul.mubr.bf16.gmra.mxu0 %v873
      %v966 = vpop.f32.mrf.mxu0
      %v967 = vadd.f32 0.0, %v966
      %v968 = vpop.f32.mrf.mxu0
      %v969 = vpop.f32.mrf.mxu0
      %v970 = vadd.f32 0.0, %v969
      %v971 = vpop.f32.mrf.mxu0
      %972 = vmatprep.mubr.bf16.mxu0 0
      %973 = vmatmul.mubr.bf16.gmra.mxu0 %v876
      %v974 = vpop.f32.mrf.mxu0
      %v975 = vadd.f32 0.0, %v974
      %v976 = vpop.f32.mrf.mxu0
      %v977 = vpop.f32.mrf.mxu0
      %v978 = vadd.f32 0.0, %v977
      %v979 = vpop.f32.mrf.mxu0
      %980 = vmatprep.mubr.bf16.mxu0 0
      %981 = vmatmul.mubr.bf16.gmra.mxu0 %v879
      %v982 = vpop.f32.mrf.mxu0
      %v983 = vadd.f32 0.0, %v982
      %v984 = vpop.f32.mrf.mxu0
      %v985 = vpop.f32.mrf.mxu0
      %v986 = vadd.f32 0.0, %v985
      %v987 = vpop.f32.mrf.mxu0
      %988 = vdwg.mxu0
      %v989 = vadd.f32 %v745, %v919
      %v990 = vadd.f32 %v746, %v922
      %v991 = vadd.f32 %v747, %v927
      %v992 = vadd.f32 %v748, %v930
      %v993 = vadd.f32 %v749, %v935
      %v994 = vadd.f32 %v750, %v938
      %v995 = vadd.f32 %v751, %v943
      %v996 = vadd.f32 %v752, %v946
      %v997 = vadd.f32 %v753, %v951
      %v998 = vadd.f32 %v754, %v954
      %v999 = vadd.f32 %v755, %v959
      %v1000 = vadd.f32 %v756, %v962
      %v1001 = vadd.f32 %v757, %v967
      %v1002 = vadd.f32 %v758, %v970
      %v1003 = vadd.f32 %v759, %v975
      %v1004 = vadd.f32 %v760, %v978
      %v1005 = vadd.f32 %v761, %v983
      %v1006 = vadd.f32 %v762, %v986
      %v1007 = vld [vmem:[%s165 + $0x50] sm:$0x3]
      %v1008 = vld [vmem:[%s1 + $0x8] sm:$0x3]
      %v1010 = vunpack.c.l.b16 %v1007
      %v1011 = vpack.c.b16 %v1010, %v1010
      %vm1012 = vsmask.f32 6400
      %v1014 = vshrl.u32 %v821, 16
      %v1016 = vrot.slane %v1014, 1
      %v1017 = vshll.u32 %v821, 16
      %v1019 = vrot.slane %v1017, 2
      %v1020 = vor.u32 %v1016, %v1019
      %v1022 = vshrl.u32 %v822, 16
      %v1024 = vrot.slane %v1022, 1
      %v1025 = vshll.u32 %v822, 16
      %v1027 = vrot.slane %v1025, 2
      %v1028 = vor.u32 %v1024, %v1027
      %v1029 = vsel %vm1012, %v1020, %v1028
      %v1031 = vshrl.u32 %v823, 16
      %v1033 = vrot.slane %v1031, 1
      %v1034 = vshll.u32 %v823, 16
      %v1036 = vrot.slane %v1034, 2
      %v1037 = vor.u32 %v1033, %v1036
      %v1038 = vsel %vm1012, %v1028, %v1037
      %v1040 = vshrl.u32 %v824, 16
      %v1042 = vrot.slane %v1040, 1
      %v1043 = vshll.u32 %v824, 16
      %v1045 = vrot.slane %v1043, 2
      %v1046 = vor.u32 %v1042, %v1045
      %v1047 = vsel %vm1012, %v1037, %v1046
      %v1049 = vshrl.u32 %v825, 16
      %v1051 = vrot.slane %v1049, 1
      %v1052 = vshll.u32 %v825, 16
      %v1054 = vrot.slane %v1052, 2
      %v1055 = vor.u32 %v1051, %v1054
      %v1056 = vsel %vm1012, %v1046, %v1055
      %v1058 = vshrl.u32 %v826, 16
      %v1060 = vrot.slane %v1058, 1
      %v1061 = vshll.u32 %v826, 16
      %v1063 = vrot.slane %v1061, 2
      %v1064 = vor.u32 %v1060, %v1063
      %v1065 = vsel %vm1012, %v1055, %v1064
      %v1067 = vshrl.u32 %v827, 16
      %v1069 = vrot.slane %v1067, 1
      %v1070 = vshll.u32 %v827, 16
      %v1072 = vrot.slane %v1070, 2
      %v1073 = vor.u32 %v1069, %v1072
      %v1074 = vsel %vm1012, %v1064, %v1073
      %v1076 = vshrl.u32 %v828, 16
      %v1078 = vrot.slane %v1076, 1
      %v1079 = vshll.u32 %v828, 16
      %v1081 = vrot.slane %v1079, 2
      %v1082 = vor.u32 %v1078, %v1081
      %v1083 = vsel %vm1012, %v1073, %v1082
      %v1085 = vshrl.u32 %v829, 16
      %v1087 = vrot.slane %v1085, 1
      %v1088 = vshll.u32 %v829, 16
      %v1090 = vrot.slane %v1088, 2
      %v1091 = vor.u32 %v1087, %v1090
      %v1092 = vsel %vm1012, %v1082, %v1091
      %v1094 = vshrl.u32 %v1011, 16
      %v1096 = vrot.slane %v1094, 1
      %v1097 = vshll.u32 %v1011, 16
      %v1099 = vrot.slane %v1097, 2
      %v1100 = vor.u32 %v1096, %v1099
      %v1101 = vsel %vm1012, %v1091, %v1100
      %v1103 = vsel %vm322, %v1029, 0
      %v1106 = vsel %vm322, %v1038, 0
      %v1109 = vsel %vm322, %v1047, 0
      %v1112 = vsel %vm322, %v1056, 0
      %v1115 = vsel %vm322, %v1065, 0
      %v1118 = vsel %vm322, %v1074, 0
      %v1121 = vsel %vm322, %v1083, 0
      %v1124 = vsel %vm322, %v1092, 0
      %v1127 = vsel %vm322, %v1101, 0
      %v1130 = vsel %vm350, %v1008, 0
      %1132 = vmatprep.subr.bf16.mxu0 0
      %1133 = vmatpush1.bf16.msra.mxu0 0
      %1134 = vmatprep.subr.bf16.mxu0 0
      %1135 = vmatpush1.bf16.msra.mxu0 0
      %1136 = vmatprep.subr.bf16.mxu0 0
      %1137 = vmatpush1.bf16.msra.mxu0 0
      %1138 = vmatprep.subr.bf16.mxu0 0
      %1139 = vmatpush1.bf16.msra.mxu0 0
      %1140 = vmatprep.subr.bf16.mxu0 0
      %1141 = vmatpush1.bf16.msra.mxu0 0
      %1142 = vmatprep.subr.bf16.mxu0 0
      %1143 = vmatpush1.bf16.msra.mxu0 0
      %1144 = vmatprep.subr.bf16.mxu0 0
      %1145 = vmatpush1.bf16.msra.mxu0 0
      %1146 = vmatprep.subr.bf16.mxu0 0
      %1147 = vmatpush1.bf16.msra.mxu0 %v1130
      %1148 = vmatprep.subr.bf16.mxu0 0
      %1149 = vmatpush2.bf16.msra.mxu0 0
      %1150 = vmatprep.subr.bf16.mxu0 0
      %1151 = vmatpush2.bf16.msra.mxu0 0
      %1152 = vmatprep.subr.bf16.mxu0 0
      %1153 = vmatpush2.bf16.msra.mxu0 0
      %1154 = vmatprep.subr.bf16.mxu0 0
      %1155 = vmatpush2.bf16.msra.mxu0 0
      %1156 = vmatprep.subr.bf16.mxu0 0
      %1157 = vmatpush2.bf16.msra.mxu0 0
      %1158 = vmatprep.subr.bf16.mxu0 0
      %1159 = vmatpush2.bf16.msra.mxu0 0
      %1160 = vmatprep.subr.bf16.mxu0 0
      %1161 = vmatpush2.bf16.msra.mxu0 0
      %1162 = vmatprep.subr.bf16.mxu0 0
      %1163 = vmatpush2.bf16.msra.mxu0 0
      %1164 = vmatprep.mubr.bf16.mxu0 0
      %1165 = vmatmul.mubr.bf16.gmra.mxu0 %v1103
      %v1166 = vpop.f32.mrf.mxu0
      %v1167 = vadd.f32 0.0, %v1166
      %v1168 = vpop.f32.mrf.mxu0
      %v1169 = vpop.f32.mrf.mxu0
      %v1170 = vadd.f32 0.0, %v1169
      %v1171 = vpop.f32.mrf.mxu0
      %1172 = vmatprep.mubr.bf16.mxu0 0
      %1173 = vmatmul.mubr.bf16.gmra.mxu0 %v1106
      %v1174 = vpop.f32.mrf.mxu0
      %v1175 = vadd.f32 0.0, %v1174
      %v1176 = vpop.f32.mrf.mxu0
      %v1177 = vpop.f32.mrf.mxu0
      %v1178 = vadd.f32 0.0, %v1177
      %v1179 = vpop.f32.mrf.mxu0
      %1180 = vmatprep.mubr.bf16.mxu0 0
      %1181 = vmatmul.mubr.bf16.gmra.mxu0 %v1109
      %v1182 = vpop.f32.mrf.mxu0
      %v1183 = vadd.f32 0.0, %v1182
      %v1184 = vpop.f32.mrf.mxu0
      %v1185 = vpop.f32.mrf.mxu0
      %v1186 = vadd.f32 0.0, %v1185
      %v1187 = vpop.f32.mrf.mxu0
      %1188 = vmatprep.mubr.bf16.mxu0 0
      %1189 = vmatmul.mubr.bf16.gmra.mxu0 %v1112
      %v1190 = vpop.f32.mrf.mxu0
      %v1191 = vadd.f32 0.0, %v1190
      %v1192 = vpop.f32.mrf.mxu0
      %v1193 = vpop.f32.mrf.mxu0
      %v1194 = vadd.f32 0.0, %v1193
      %v1195 = vpop.f32.mrf.mxu0
      %1196 = vmatprep.mubr.bf16.mxu0 0
      %1197 = vmatmul.mubr.bf16.gmra.mxu0 %v1115
      %v1198 = vpop.f32.mrf.mxu0
      %v1199 = vadd.f32 0.0, %v1198
      %v1200 = vpop.f32.mrf.mxu0
      %v1201 = vpop.f32.mrf.mxu0
      %v1202 = vadd.f32 0.0, %v1201
      %v1203 = vpop.f32.mrf.mxu0
      %1204 = vmatprep.mubr.bf16.mxu0 0
      %1205 = vmatmul.mubr.bf16.gmra.mxu0 %v1118
      %v1206 = vpop.f32.mrf.mxu0
      %v1207 = vadd.f32 0.0, %v1206
      %v1208 = vpop.f32.mrf.mxu0
      %v1209 = vpop.f32.mrf.mxu0
      %v1210 = vadd.f32 0.0, %v1209
      %v1211 = vpop.f32.mrf.mxu0
      %1212 = vmatprep.mubr.bf16.mxu0 0
      %1213 = vmatmul.mubr.bf16.gmra.mxu0 %v1121
      %v1214 = vpop.f32.mrf.mxu0
      %v1215 = vadd.f32 0.0, %v1214
      %v1216 = vpop.f32.mrf.mxu0
      %v1217 = vpop.f32.mrf.mxu0
      %v1218 = vadd.f32 0.0, %v1217
      %v1219 = vpop.f32.mrf.mxu0
      %1220 = vmatprep.mubr.bf16.mxu0 0
      %1221 = vmatmul.mubr.bf16.gmra.mxu0 %v1124
      %v1222 = vpop.f32.mrf.mxu0
      %v1223 = vadd.f32 0.0, %v1222
      %v1224 = vpop.f32.mrf.mxu0
      %v1225 = vpop.f32.mrf.mxu0
      %v1226 = vadd.f32 0.0, %v1225
      %v1227 = vpop.f32.mrf.mxu0
      %1228 = vmatprep.mubr.bf16.mxu0 0
      %1229 = vmatmul.mubr.bf16.gmra.mxu0 %v1127
      %v1230 = vpop.f32.mrf.mxu0
      %v1231 = vadd.f32 0.0, %v1230
      %v1232 = vpop.f32.mrf.mxu0
      %v1233 = vpop.f32.mrf.mxu0
      %v1234 = vadd.f32 0.0, %v1233
      %v1235 = vpop.f32.mrf.mxu0
      %1236 = vdwg.mxu0
      %v1237 = vadd.f32 %v989, %v1167
      %v1238 = vadd.f32 %v990, %v1170
      %v1239 = vadd.f32 %v991, %v1175
      %v1240 = vadd.f32 %v992, %v1178
      %v1241 = vadd.f32 %v993, %v1183
      %v1242 = vadd.f32 %v994, %v1186
      %v1243 = vadd.f32 %v995, %v1191
      %v1244 = vadd.f32 %v996, %v1194
      %v1245 = vadd.f32 %v997, %v1199
      %v1246 = vadd.f32 %v998, %v1202
      %v1247 = vadd.f32 %v999, %v1207
      %v1248 = vadd.f32 %v1000, %v1210
      %v1249 = vadd.f32 %v1001, %v1215
      %v1250 = vadd.f32 %v1002, %v1218
      %v1251 = vadd.f32 %v1003, %v1223
      %v1252 = vadd.f32 %v1004, %v1226
      %v1253 = vadd.f32 %v1005, %v1231
      %v1254 = vadd.f32 %v1006, %v1234
      %v1255 = vld [vmem:[%s165 + $0x8] sm:$0xc]
      %v1256 = vld [vmem:[%s1 + $0x8] sm:$0xc]
      %v1258 = vunpack.c.l.b16 %v1255
      %v1259 = vpack.c.b16 %v803, %v1258
      %vm1260 = vcmask 1045504
      %v1261 = vrot.slane %v1259, 2
      %v1262 = vrot.slane %v822, 2
      %v1263 = vsel %vm1260, %v1261, %v1262
      %v1264 = vrot.slane %v823, 2
      %v1265 = vsel %vm1260, %v1262, %v1264
      %v1266 = vrot.slane %v824, 2
      %v1267 = vsel %vm1260, %v1264, %v1266
      %v1268 = vrot.slane %v825, 2
      %v1269 = vsel %vm1260, %v1266, %v1268
      %v1270 = vrot.slane %v826, 2
      %v1271 = vsel %vm1260, %v1268, %v1270
      %v1272 = vrot.slane %v827, 2
      %v1273 = vsel %vm1260, %v1270, %v1272
      %v1274 = vrot.slane %v828, 2
      %v1275 = vsel %vm1260, %v1272, %v1274
      %v1276 = vrot.slane %v829, 2
      %v1277 = vsel %vm1260, %v1274, %v1276
      %v1278 = vrot.slane %v1011, 2
      %v1279 = vsel %vm1260, %v1276, %v1278
      %v1281 = vunpack.c.l.b16 %v1256
      %v1282 = vpack.c.b16 %v1281, %v1281
      %v1283 = vrot.slane %v1282, 2
      %v1285 = vsel %vm322, %v1263, 0
      %v1288 = vsel %vm322, %v1265, 0
      %v1291 = vsel %vm322, %v1267, 0
      %v1294 = vsel %vm322, %v1269, 0
      %v1297 = vsel %vm322, %v1271, 0
      %v1300 = vsel %vm322, %v1273, 0
      %v1303 = vsel %vm322, %v1275, 0
      %v1306 = vsel %vm322, %v1277, 0
      %v1309 = vsel %vm322, %v1279, 0
      %v1312 = vsel %vm350, %v1283, 0
      %1314 = vmatprep.subr.bf16.mxu0 0
      %1315 = vmatpush1.bf16.msra.mxu0 0
      %1316 = vmatprep.subr.bf16.mxu0 0
      %1317 = vmatpush1.bf16.msra.mxu0 0
      %1318 = vmatprep.subr.bf16.mxu0 0
      %1319 = vmatpush1.bf16.msra.mxu0 0
      %1320 = vmatprep.subr.bf16.mxu0 0
      %1321 = vmatpush1.bf16.msra.mxu0 0
      %1322 = vmatprep.subr.bf16.mxu0 0
      %1323 = vmatpush1.bf16.msra.mxu0 0
      %1324 = vmatprep.subr.bf16.mxu0 0
      %1325 = vmatpush1.bf16.msra.mxu0 0
      %1326 = vmatprep.subr.bf16.mxu0 0
      %1327 = vmatpush1.bf16.msra.mxu0 0
      %1328 = vmatprep.subr.bf16.mxu0 0
      %1329 = vmatpush1.bf16.msra.mxu0 %v1312
      %1330 = vmatprep.subr.bf16.mxu0 0
      %1331 = vmatpush2.bf16.msra.mxu0 0
      %1332 = vmatprep.subr.bf16.mxu0 0
      %1333 = vmatpush2.bf16.msra.mxu0 0
      %1334 = vmatprep.subr.bf16.mxu0 0
      %1335 = vmatpush2.bf16.msra.mxu0 0
      %1336 = vmatprep.subr.bf16.mxu0 0
      %1337 = vmatpush2.bf16.msra.mxu0 0
      %1338 = vmatprep.subr.bf16.mxu0 0
      %1339 = vmatpush2.bf16.msra.mxu0 0
      %1340 = vmatprep.subr.bf16.mxu0 0
      %1341 = vmatpush2.bf16.msra.mxu0 0
      %1342 = vmatprep.subr.bf16.mxu0 0
      %1343 = vmatpush2.bf16.msra.mxu0 0
      %1344 = vmatprep.subr.bf16.mxu0 0
      %1345 = vmatpush2.bf16.msra.mxu0 0
      %1346 = vmatprep.mubr.bf16.mxu0 0
      %1347 = vmatmul.mubr.bf16.gmra.mxu0 %v1285
      %v1348 = vpop.f32.mrf.mxu0
      %v1349 = vadd.f32 0.0, %v1348
      %v1350 = vpop.f32.mrf.mxu0
      %v1351 = vpop.f32.mrf.mxu0
      %v1352 = vadd.f32 0.0, %v1351
      %v1353 = vpop.f32.mrf.mxu0
      %1354 = vmatprep.mubr.bf16.mxu0 0
      %1355 = vmatmul.mubr.bf16.gmra.mxu0 %v1288
      %v1356 = vpop.f32.mrf.mxu0
      %v1357 = vadd.f32 0.0, %v1356
      %v1358 = vpop.f32.mrf.mxu0
      %v1359 = vpop.f32.mrf.mxu0
      %v1360 = vadd.f32 0.0, %v1359
      %v1361 = vpop.f32.mrf.mxu0
      %1362 = vmatprep.mubr.bf16.mxu0 0
      %1363 = vmatmul.mubr.bf16.gmra.mxu0 %v1291
      %v1364 = vpop.f32.mrf.mxu0
      %v1365 = vadd.f32 0.0, %v1364
      %v1366 = vpop.f32.mrf.mxu0
      %v1367 = vpop.f32.mrf.mxu0
      %v1368 = vadd.f32 0.0, %v1367
      %v1369 = vpop.f32.mrf.mxu0
      %1370 = vmatprep.mubr.bf16.mxu0 0
      %1371 = vmatmul.mubr.bf16.gmra.mxu0 %v1294
      %v1372 = vpop.f32.mrf.mxu0
      %v1373 = vadd.f32 0.0, %v1372
      %v1374 = vpop.f32.mrf.mxu0
      %v1375 = vpop.f32.mrf.mxu0
      %v1376 = vadd.f32 0.0, %v1375
      %v1377 = vpop.f32.mrf.mxu0
      %1378 = vmatprep.mubr.bf16.mxu0 0
      %1379 = vmatmul.mubr.bf16.gmra.mxu0 %v1297
      %v1380 = vpop.f32.mrf.mxu0
      %v1381 = vadd.f32 0.0, %v1380
      %v1382 = vpop.f32.mrf.mxu0
      %v1383 = vpop.f32.mrf.mxu0
      %v1384 = vadd.f32 0.0, %v1383
      %v1385 = vpop.f32.mrf.mxu0
      %1386 = vmatprep.mubr.bf16.mxu0 0
      %1387 = vmatmul.mubr.bf16.gmra.mxu0 %v1300
      %v1388 = vpop.f32.mrf.mxu0
      %v1389 = vadd.f32 0.0, %v1388
      %v1390 = vpop.f32.mrf.mxu0
      %v1391 = vpop.f32.mrf.mxu0
      %v1392 = vadd.f32 0.0, %v1391
      %v1393 = vpop.f32.mrf.mxu0
      %1394 = vmatprep.mubr.bf16.mxu0 0
      %1395 = vmatmul.mubr.bf16.gmra.mxu0 %v1303
      %v1396 = vpop.f32.mrf.mxu0
      %v1397 = vadd.f32 0.0, %v1396
      %v1398 = vpop.f32.mrf.mxu0
      %v1399 = vpop.f32.mrf.mxu0
      %v1400 = vadd.f32 0.0, %v1399
      %v1401 = vpop.f32.mrf.mxu0
      %1402 = vmatprep.mubr.bf16.mxu0 0
      %1403 = vmatmul.mubr.bf16.gmra.mxu0 %v1306
      %v1404 = vpop.f32.mrf.mxu0
      %v1405 = vadd.f32 0.0, %v1404
      %v1406 = vpop.f32.mrf.mxu0
      %v1407 = vpop.f32.mrf.mxu0
      %v1408 = vadd.f32 0.0, %v1407
      %v1409 = vpop.f32.mrf.mxu0
      %1410 = vmatprep.mubr.bf16.mxu0 0
      %1411 = vmatmul.mubr.bf16.gmra.mxu0 %v1309
      %v1412 = vpop.f32.mrf.mxu0
      %v1413 = vadd.f32 0.0, %v1412
      %v1414 = vpop.f32.mrf.mxu0
      %v1415 = vpop.f32.mrf.mxu0
      %v1416 = vadd.f32 0.0, %v1415
      %v1417 = vpop.f32.mrf.mxu0
      %1418 = vdwg.mxu0
      %v1419 = vadd.f32 %v1237, %v1349
      %v1420 = vadd.f32 %v1238, %v1352
      %v1421 = vadd.f32 %v1239, %v1357
      %v1422 = vadd.f32 %v1240, %v1360
      %v1423 = vadd.f32 %v1241, %v1365
      %v1424 = vadd.f32 %v1242, %v1368
      %v1425 = vadd.f32 %v1243, %v1373
      %v1426 = vadd.f32 %v1244, %v1376
      %v1427 = vadd.f32 %v1245, %v1381
      %v1428 = vadd.f32 %v1246, %v1384
      %v1429 = vadd.f32 %v1247, %v1389
      %v1430 = vadd.f32 %v1248, %v1392
      %v1431 = vadd.f32 %v1249, %v1397
      %v1432 = vadd.f32 %v1250, %v1400
      %v1433 = vadd.f32 %v1251, %v1405
      %v1434 = vadd.f32 %v1252, %v1408
      %v1435 = vadd.f32 %v1253, %v1413
      %v1436 = vadd.f32 %v1254, %v1416
      %v1437 = vld [vmem:[%s165 + $0x10] sm:$0xc]
      %v1438 = vld [vmem:[%s165 + $0x14] sm:$0xf]
      %v1439 = vld [vmem:[%s165 + $0x18] sm:$0xf]
      %v1440 = vld [vmem:[%s165 + $0x1c] sm:$0xf]
      %v1441 = vld [vmem:[%s165 + $0x20] sm:$0xf]
      %v1442 = vld [vmem:[%s165 + $0x24] sm:$0xf]
      %v1443 = vld [vmem:[%s165 + $0x28] sm:$0xf]
      %v1444 = vld [vmem:[%s165 + $0x2c] sm:$0xf]
      %v1445 = vld [vmem:[%s165 + $0x30] sm:$0xf]
      %v1446 = vld [vmem:[%s165 + $0x34] sm:$0xf]
      %v1447 = vld [vmem:[%s165 + $0x38] sm:$0xf]
      %v1448 = vld [vmem:[%s165 + $0x3c] sm:$0xf]
      %v1449 = vld [vmem:[%s165 + $0x40] sm:$0xf]
      %v1450 = vld [vmem:[%s165 + $0x44] sm:$0xf]
      %v1451 = vld [vmem:[%s165 + $0x48] sm:$0xf]
      %v1452 = vld [vmem:[%s165 + $0x4c] sm:$0xf]
      %v1453 = vld [vmem:[%s165 + $0x50] sm:$0xf]
      %v1454 = vld [vmem:[%s165 + $0x54] sm:$0xf]
      %v1455 = vld [vmem:[%s165 + $0x58] sm:$0x3]
      %v1456 = vld [vmem:[%s1 + $0xc] sm:$0x3]
      %v1476 = vunpack.c.l.b16 %v1437
      %v1477 = vunpack.c.l.b16 %v1438
      %v1478 = vunpack.c.l.b16 %v1439
      %v1479 = vunpack.c.l.b16 %v1440
      %v1480 = vunpack.c.l.b16 %v1441
      %v1481 = vunpack.c.l.b16 %v1442
      %v1482 = vunpack.c.l.b16 %v1443
      %v1483 = vunpack.c.l.b16 %v1444
      %v1484 = vunpack.c.l.b16 %v1445
      %v1485 = vunpack.c.l.b16 %v1446
      %v1486 = vunpack.c.l.b16 %v1447
      %v1487 = vunpack.c.l.b16 %v1448
      %v1488 = vunpack.c.l.b16 %v1449
      %v1489 = vunpack.c.l.b16 %v1450
      %v1490 = vunpack.c.l.b16 %v1451
      %v1491 = vunpack.c.l.b16 %v1452
      %v1492 = vunpack.c.l.b16 %v1453
      %v1493 = vunpack.c.l.b16 %v1454
      %v1494 = vunpack.c.l.b16 %v1455
      %v1495 = vpack.c.b16 %v1477, %v1476
      %v1496 = vpack.c.b16 %v1479, %v1478
      %v1497 = vpack.c.b16 %v1481, %v1480
      %v1498 = vpack.c.b16 %v1483, %v1482
      %v1499 = vpack.c.b16 %v1485, %v1484
      %v1500 = vpack.c.b16 %v1487, %v1486
      %v1501 = vpack.c.b16 %v1489, %v1488
      %v1502 = vpack.c.b16 %v1491, %v1490
      %v1503 = vpack.c.b16 %v1493, %v1492
      %v1504 = vpack.c.b16 %v1494, %v1494
      %v1505 = vrot.slane %v1495, 2
      %v1506 = vrot.slane %v1496, 2
      %v1507 = vsel %vm1260, %v1505, %v1506
      %v1508 = vrot.slane %v1497, 2
      %v1509 = vsel %vm1260, %v1506, %v1508
      %v1510 = vrot.slane %v1498, 2
      %v1511 = vsel %vm1260, %v1508, %v1510
      %v1512 = vrot.slane %v1499, 2
      %v1513 = vsel %vm1260, %v1510, %v1512
      %v1514 = vrot.slane %v1500, 2
      %v1515 = vsel %vm1260, %v1512, %v1514
      %v1516 = vrot.slane %v1501, 2
      %v1517 = vsel %vm1260, %v1514, %v1516
      %v1518 = vrot.slane %v1502, 2
      %v1519 = vsel %vm1260, %v1516, %v1518
      %v1520 = vrot.slane %v1503, 2
      %v1521 = vsel %vm1260, %v1518, %v1520
      %v1522 = vrot.slane %v1504, 2
      %v1523 = vsel %vm1260, %v1520, %v1522
      %v1525 = vsel %vm322, %v1507, 0
      %v1528 = vsel %vm322, %v1509, 0
      %v1531 = vsel %vm322, %v1511, 0
      %v1534 = vsel %vm322, %v1513, 0
      %v1537 = vsel %vm322, %v1515, 0
      %v1540 = vsel %vm322, %v1517, 0
      %v1543 = vsel %vm322, %v1519, 0
      %v1546 = vsel %vm322, %v1521, 0
      %v1549 = vsel %vm322, %v1523, 0
      %v1552 = vsel %vm350, %v1456, 0
      %1554 = vmatprep.subr.bf16.mxu0 0
      %1555 = vmatpush1.bf16.msra.mxu0 0
      %1556 = vmatprep.subr.bf16.mxu0 0
      %1557 = vmatpush1.bf16.msra.mxu0 0
      %1558 = vmatprep.subr.bf16.mxu0 0
      %1559 = vmatpush1.bf16.msra.mxu0 0
      %1560 = vmatprep.subr.bf16.mxu0 0
      %1561 = vmatpush1.bf16.msra.mxu0 0
      %1562 = vmatprep.subr.bf16.mxu0 0
      %1563 = vmatpush1.bf16.msra.mxu0 0
      %1564 = vmatprep.subr.bf16.mxu0 0
      %1565 = vmatpush1.bf16.msra.mxu0 0
      %1566 = vmatprep.subr.bf16.mxu0 0
      %1567 = vmatpush1.bf16.msra.mxu0 0
      %1568 = vmatprep.subr.bf16.mxu0 0
      %1569 = vmatpush1.bf16.msra.mxu0 %v1552
      %1570 = vmatprep.subr.bf16.mxu0 0
      %1571 = vmatpush2.bf16.msra.mxu0 0
      %1572 = vmatprep.subr.bf16.mxu0 0
      %1573 = vmatpush2.bf16.msra.mxu0 0
      %1574 = vmatprep.subr.bf16.mxu0 0
      %1575 = vmatpush2.bf16.msra.mxu0 0
      %1576 = vmatprep.subr.bf16.mxu0 0
      %1577 = vmatpush2.bf16.msra.mxu0 0
      %1578 = vmatprep.subr.bf16.mxu0 0
      %1579 = vmatpush2.bf16.msra.mxu0 0
      %1580 = vmatprep.subr.bf16.mxu0 0
      %1581 = vmatpush2.bf16.msra.mxu0 0
      %1582 = vmatprep.subr.bf16.mxu0 0
      %1583 = vmatpush2.bf16.msra.mxu0 0
      %1584 = vmatprep.subr.bf16.mxu0 0
      %1585 = vmatpush2.bf16.msra.mxu0 0
      %1586 = vmatprep.mubr.bf16.mxu0 0
      %1587 = vmatmul.mubr.bf16.gmra.mxu0 %v1525
      %v1588 = vpop.f32.mrf.mxu0
      %v1589 = vadd.f32 0.0, %v1588
      %v1590 = vpop.f32.mrf.mxu0
      %v1591 = vpop.f32.mrf.mxu0
      %v1592 = vadd.f32 0.0, %v1591
      %v1593 = vpop.f32.mrf.mxu0
      %1594 = vmatprep.mubr.bf16.mxu0 0
      %1595 = vmatmul.mubr.bf16.gmra.mxu0 %v1528
      %v1596 = vpop.f32.mrf.mxu0
      %v1597 = vadd.f32 0.0, %v1596
      %v1598 = vpop.f32.mrf.mxu0
      %v1599 = vpop.f32.mrf.mxu0
      %v1600 = vadd.f32 0.0, %v1599
      %v1601 = vpop.f32.mrf.mxu0
      %1602 = vmatprep.mubr.bf16.mxu0 0
      %1603 = vmatmul.mubr.bf16.gmra.mxu0 %v1531
      %v1604 = vpop.f32.mrf.mxu0
      %v1605 = vadd.f32 0.0, %v1604
      %v1606 = vpop.f32.mrf.mxu0
      %v1607 = vpop.f32.mrf.mxu0
      %v1608 = vadd.f32 0.0, %v1607
      %v1609 = vpop.f32.mrf.mxu0
      %1610 = vmatprep.mubr.bf16.mxu0 0
      %1611 = vmatmul.mubr.bf16.gmra.mxu0 %v1534
      %v1612 = vpop.f32.mrf.mxu0
      %v1613 = vadd.f32 0.0, %v1612
      %v1614 = vpop.f32.mrf.mxu0
      %v1615 = vpop.f32.mrf.mxu0
      %v1616 = vadd.f32 0.0, %v1615
      %v1617 = vpop.f32.mrf.mxu0
      %1618 = vmatprep.mubr.bf16.mxu0 0
      %1619 = vmatmul.mubr.bf16.gmra.mxu0 %v1537
      %v1620 = vpop.f32.mrf.mxu0
      %v1621 = vadd.f32 0.0, %v1620
      %v1622 = vpop.f32.mrf.mxu0
      %v1623 = vpop.f32.mrf.mxu0
      %v1624 = vadd.f32 0.0, %v1623
      %v1625 = vpop.f32.mrf.mxu0
      %1626 = vmatprep.mubr.bf16.mxu0 0
      %1627 = vmatmul.mubr.bf16.gmra.mxu0 %v1540
      %v1628 = vpop.f32.mrf.mxu0
      %v1629 = vadd.f32 0.0, %v1628
      %v1630 = vpop.f32.mrf.mxu0
      %v1631 = vpop.f32.mrf.mxu0
      %v1632 = vadd.f32 0.0, %v1631
      %v1633 = vpop.f32.mrf.mxu0
      %1634 = vmatprep.mubr.bf16.mxu0 0
      %1635 = vmatmul.mubr.bf16.gmra.mxu0 %v1543
      %v1636 = vpop.f32.mrf.mxu0
      %v1637 = vadd.f32 0.0, %v1636
      %v1638 = vpop.f32.mrf.mxu0
      %v1639 = vpop.f32.mrf.mxu0
      %v1640 = vadd.f32 0.0, %v1639
      %v1641 = vpop.f32.mrf.mxu0
      %1642 = vmatprep.mubr.bf16.mxu0 0
      %1643 = vmatmul.mubr.bf16.gmra.mxu0 %v1546
      %v1644 = vpop.f32.mrf.mxu0
      %v1645 = vadd.f32 0.0, %v1644
      %v1646 = vpop.f32.mrf.mxu0
      %v1647 = vpop.f32.mrf.mxu0
      %v1648 = vadd.f32 0.0, %v1647
      %v1649 = vpop.f32.mrf.mxu0
      %1650 = vmatprep.mubr.bf16.mxu0 0
      %1651 = vmatmul.mubr.bf16.gmra.mxu0 %v1549
      %v1652 = vpop.f32.mrf.mxu0
      %v1653 = vadd.f32 0.0, %v1652
      %v1654 = vpop.f32.mrf.mxu0
      %v1655 = vpop.f32.mrf.mxu0
      %v1656 = vadd.f32 0.0, %v1655
      %v1657 = vpop.f32.mrf.mxu0
      %1658 = vdwg.mxu0
      %v1659 = vadd.f32 %v1419, %v1589
      %v1660 = vadd.f32 %v1420, %v1592
      %v1661 = vadd.f32 %v1421, %v1597
      %v1662 = vadd.f32 %v1422, %v1600
      %v1663 = vadd.f32 %v1423, %v1605
      %v1664 = vadd.f32 %v1424, %v1608
      %v1665 = vadd.f32 %v1425, %v1613
      %v1666 = vadd.f32 %v1426, %v1616
      %v1667 = vadd.f32 %v1427, %v1621
      %v1668 = vadd.f32 %v1428, %v1624
      %v1669 = vadd.f32 %v1429, %v1629
      %v1670 = vadd.f32 %v1430, %v1632
      %v1671 = vadd.f32 %v1431, %v1637
      %v1672 = vadd.f32 %v1432, %v1640
      %v1673 = vadd.f32 %v1433, %v1645
      %v1674 = vadd.f32 %v1434, %v1648
      %v1675 = vadd.f32 %v1435, %v1653
      %v1676 = vadd.f32 %v1436, %v1656
      %v1677 = vld [vmem:[%s165 + $0x58] sm:$0x7]
      %v1678 = vld [vmem:[%s1 + $0xc] sm:$0xc]
      %v1680 = vunpack.c.l.b16 %v1677
      %v1681 = vpack.c.b16 %v1680, %v1680
      %vm1682 = vsmask.f32 5376
      %v1684 = vshrl.u32 %v1495, 16
      %v1686 = vrot.slane %v1684, 2
      %v1687 = vshll.u32 %v1495, 16
      %v1689 = vrot.slane %v1687, 3
      %v1690 = vor.u32 %v1686, %v1689
      %v1692 = vshrl.u32 %v1496, 16
      %v1694 = vrot.slane %v1692, 2
      %v1695 = vshll.u32 %v1496, 16
      %v1697 = vrot.slane %v1695, 3
      %v1698 = vor.u32 %v1694, %v1697
      %v1699 = vsel %vm1682, %v1690, %v1698
      %v1701 = vshrl.u32 %v1497, 16
      %v1703 = vrot.slane %v1701, 2
      %v1704 = vshll.u32 %v1497, 16
      %v1706 = vrot.slane %v1704, 3
      %v1707 = vor.u32 %v1703, %v1706
      %v1708 = vsel %vm1682, %v1698, %v1707
      %v1710 = vshrl.u32 %v1498, 16
      %v1712 = vrot.slane %v1710, 2
      %v1713 = vshll.u32 %v1498, 16
      %v1715 = vrot.slane %v1713, 3
      %v1716 = vor.u32 %v1712, %v1715
      %v1717 = vsel %vm1682, %v1707, %v1716
      %v1719 = vshrl.u32 %v1499, 16
      %v1721 = vrot.slane %v1719, 2
      %v1722 = vshll.u32 %v1499, 16
      %v1724 = vrot.slane %v1722, 3
      %v1725 = vor.u32 %v1721, %v1724
      %v1726 = vsel %vm1682, %v1716, %v1725
      %v1728 = vshrl.u32 %v1500, 16
      %v1730 = vrot.slane %v1728, 2
      %v1731 = vshll.u32 %v1500, 16
      %v1733 = vrot.slane %v1731, 3
      %v1734 = vor.u32 %v1730, %v1733
      %v1735 = vsel %vm1682, %v1725, %v1734
      %v1737 = vshrl.u32 %v1501, 16
      %v1739 = vrot.slane %v1737, 2
      %v1740 = vshll.u32 %v1501, 16
      %v1742 = vrot.slane %v1740, 3
      %v1743 = vor.u32 %v1739, %v1742
      %v1744 = vsel %vm1682, %v1734, %v1743
      %v1746 = vshrl.u32 %v1502, 16
      %v1748 = vrot.slane %v1746, 2
      %v1749 = vshll.u32 %v1502, 16
      %v1751 = vrot.slane %v1749, 3
      %v1752 = vor.u32 %v1748, %v1751
      %v1753 = vsel %vm1682, %v1743, %v1752
      %v1755 = vshrl.u32 %v1503, 16
      %v1757 = vrot.slane %v1755, 2
      %v1758 = vshll.u32 %v1503, 16
      %v1760 = vrot.slane %v1758, 3
      %v1761 = vor.u32 %v1757, %v1760
      %v1762 = vsel %vm1682, %v1752, %v1761
      %v1764 = vshrl.u32 %v1681, 16
      %v1766 = vrot.slane %v1764, 2
      %v1767 = vshll.u32 %v1681, 16
      %v1769 = vrot.slane %v1767, 3
      %v1770 = vor.u32 %v1766, %v1769
      %v1771 = vsel %vm1682, %v1761, %v1770
      %v1773 = vunpack.c.l.b16 %v1678
      %v1774 = vpack.c.b16 %v1773, %v1773
      %v1775 = vrot.slane %v1774, 2
      %v1777 = vsel %vm322, %v1699, 0
      %v1780 = vsel %vm322, %v1708, 0
      %v1783 = vsel %vm322, %v1717, 0
      %v1786 = vsel %vm322, %v1726, 0
      %v1789 = vsel %vm322, %v1735, 0
      %v1792 = vsel %vm322, %v1744, 0
      %v1795 = vsel %vm322, %v1753, 0
      %v1798 = vsel %vm322, %v1762, 0
      %v1801 = vsel %vm322, %v1771, 0
      %v1804 = vsel %vm350, %v1775, 0
      %1806 = vmatprep.subr.bf16.mxu0 0
      %1807 = vmatpush1.bf16.msra.mxu0 0
      %1808 = vmatprep.subr.bf16.mxu0 0
      %1809 = vmatpush1.bf16.msra.mxu0 0
      %1810 = vmatprep.subr.bf16.mxu0 0
      %1811 = vmatpush1.bf16.msra.mxu0 0
      %1812 = vmatprep.subr.bf16.mxu0 0
      %1813 = vmatpush1.bf16.msra.mxu0 0
      %1814 = vmatprep.subr.bf16.mxu0 0
      %1815 = vmatpush1.bf16.msra.mxu0 0
      %1816 = vmatprep.subr.bf16.mxu0 0
      %1817 = vmatpush1.bf16.msra.mxu0 0
      %1818 = vmatprep.subr.bf16.mxu0 0
      %1819 = vmatpush1.bf16.msra.mxu0 0
      %1820 = vmatprep.subr.bf16.mxu0 0
      %1821 = vmatpush1.bf16.msra.mxu0 %v1804
      %1822 = vmatprep.subr.bf16.mxu0 0
      %1823 = vmatpush2.bf16.msra.mxu0 0
      %1824 = vmatprep.subr.bf16.mxu0 0
      %1825 = vmatpush2.bf16.msra.mxu0 0
      %1826 = vmatprep.subr.bf16.mxu0 0
      %1827 = vmatpush2.bf16.msra.mxu0 0
      %1828 = vmatprep.subr.bf16.mxu0 0
      %1829 = vmatpush2.bf16.msra.mxu0 0
      %1830 = vmatprep.subr.bf16.mxu0 0
      %1831 = vmatpush2.bf16.msra.mxu0 0
      %1832 = vmatprep.subr.bf16.mxu0 0
      %1833 = vmatpush2.bf16.msra.mxu0 0
      %1834 = vmatprep.subr.bf16.mxu0 0
      %1835 = vmatpush2.bf16.msra.mxu0 0
      %1836 = vmatprep.subr.bf16.mxu0 0
      %1837 = vmatpush2.bf16.msra.mxu0 0
      %1838 = vmatprep.mubr.bf16.mxu0 0
      %1839 = vmatmul.mubr.bf16.gmra.mxu0 %v1777
      %v1840 = vpop.f32.mrf.mxu0
      %v1841 = vadd.f32 0.0, %v1840
      %v1842 = vpop.f32.mrf.mxu0
      %v1843 = vpop.f32.mrf.mxu0
      %v1844 = vadd.f32 0.0, %v1843
      %v1845 = vpop.f32.mrf.mxu0
      %1846 = vmatprep.mubr.bf16.mxu0 0
      %1847 = vmatmul.mubr.bf16.gmra.mxu0 %v1780
      %v1848 = vpop.f32.mrf.mxu0
      %v1849 = vadd.f32 0.0, %v1848
      %v1850 = vpop.f32.mrf.mxu0
      %v1851 = vpop.f32.mrf.mxu0
      %v1852 = vadd.f32 0.0, %v1851
      %v1853 = vpop.f32.mrf.mxu0
      %1854 = vmatprep.mubr.bf16.mxu0 0
      %1855 = vmatmul.mubr.bf16.gmra.mxu0 %v1783
      %v1856 = vpop.f32.mrf.mxu0
      %v1857 = vadd.f32 0.0, %v1856
      %v1858 = vpop.f32.mrf.mxu0
      %v1859 = vpop.f32.mrf.mxu0
      %v1860 = vadd.f32 0.0, %v1859
      %v1861 = vpop.f32.mrf.mxu0
      %1862 = vmatprep.mubr.bf16.mxu0 0
      %1863 = vmatmul.mubr.bf16.gmra.mxu0 %v1786
      %v1864 = vpop.f32.mrf.mxu0
      %v1865 = vadd.f32 0.0, %v1864
      %v1866 = vpop.f32.mrf.mxu0
      %v1867 = vpop.f32.mrf.mxu0
      %v1868 = vadd.f32 0.0, %v1867
      %v1869 = vpop.f32.mrf.mxu0
      %1870 = vmatprep.mubr.bf16.mxu0 0
      %1871 = vmatmul.mubr.bf16.gmra.mxu0 %v1789
      %v1872 = vpop.f32.mrf.mxu0
      %v1873 = vadd.f32 0.0, %v1872
      %v1874 = vpop.f32.mrf.mxu0
      %v1875 = vpop.f32.mrf.mxu0
      %v1876 = vadd.f32 0.0, %v1875
      %v1877 = vpop.f32.mrf.mxu0
      %1878 = vmatprep.mubr.bf16.mxu0 0
      %1879 = vmatmul.mubr.bf16.gmra.mxu0 %v1792
      %v1880 = vpop.f32.mrf.mxu0
      %v1881 = vadd.f32 0.0, %v1880
      %v1882 = vpop.f32.mrf.mxu0
      %v1883 = vpop.f32.mrf.mxu0
      %v1884 = vadd.f32 0.0, %v1883
      %v1885 = vpop.f32.mrf.mxu0
      %1886 = vmatprep.mubr.bf16.mxu0 0
      %1887 = vmatmul.mubr.bf16.gmra.mxu0 %v1795
      %v1888 = vpop.f32.mrf.mxu0
      %v1889 = vadd.f32 0.0, %v1888
      %v1890 = vpop.f32.mrf.mxu0
      %v1891 = vpop.f32.mrf.mxu0
      %v1892 = vadd.f32 0.0, %v1891
      %v1893 = vpop.f32.mrf.mxu0
      %1894 = vmatprep.mubr.bf16.mxu0 0
      %1895 = vmatmul.mubr.bf16.gmra.mxu0 %v1798
      %v1896 = vpop.f32.mrf.mxu0
      %v1897 = vadd.f32 0.0, %v1896
      %v1898 = vpop.f32.mrf.mxu0
      %v1899 = vpop.f32.mrf.mxu0
      %v1900 = vadd.f32 0.0, %v1899
      %v1901 = vpop.f32.mrf.mxu0
      %1902 = vmatprep.mubr.bf16.mxu0 0
      %1903 = vmatmul.mubr.bf16.gmra.mxu0 %v1801
      %v1904 = vpop.f32.mrf.mxu0
      %v1905 = vadd.f32 0.0, %v1904
      %v1906 = vpop.f32.mrf.mxu0
      %v1907 = vpop.f32.mrf.mxu0
      %v1908 = vadd.f32 0.0, %v1907
      %v1909 = vpop.f32.mrf.mxu0
      %1910 = vdwg.mxu0
      %v1911 = vadd.f32 %v1659, %v1841
      %v1912 = vadd.f32 %v1660, %v1844
      %v1913 = vadd.f32 %v1661, %v1849
      %v1914 = vadd.f32 %v1662, %v1852
      %v1915 = vadd.f32 %v1663, %v1857
      %v1916 = vadd.f32 %v1664, %v1860
      %v1917 = vadd.f32 %v1665, %v1865
      %v1918 = vadd.f32 %v1666, %v1868
      %v1919 = vadd.f32 %v1667, %v1873
      %v1920 = vadd.f32 %v1668, %v1876
      %v1921 = vadd.f32 %v1669, %v1881
      %v1922 = vadd.f32 %v1670, %v1884
      %v1923 = vadd.f32 %v1671, %v1889
      %v1924 = vadd.f32 %v1672, %v1892
      %v1925 = vadd.f32 %v1673, %v1897
      %v1926 = vadd.f32 %v1674, %v1900
      %v1927 = vadd.f32 %v1675, %v1905
      %v1928 = vadd.f32 %v1676, %v1908
      %v1929 = vld [vmem:[%s165 + $0x10] sm:$0x8]
      %v1930 = vld [vmem:[%s1 + $0x10] sm:$0x3]
      %v1932 = vunpack.c.l.b16 %v1929
      %v1933 = vpack.c.b16 %v1477, %v1932
      %vm1934 = vcmask 1044480
      %v1935 = vrot.slane %v1933, 3
      %v1936 = vrot.slane %v1496, 3
      %v1937 = vsel %vm1934, %v1935, %v1936
      %v1938 = vrot.slane %v1497, 3
      %v1939 = vsel %vm1934, %v1936, %v1938
      %v1940 = vrot.slane %v1498, 3
      %v1941 = vsel %vm1934, %v1938, %v1940
      %v1942 = vrot.slane %v1499, 3
      %v1943 = vsel %vm1934, %v1940, %v1942
      %v1944 = vrot.slane %v1500, 3
      %v1945 = vsel %vm1934, %v1942, %v1944
      %v1946 = vrot.slane %v1501, 3
      %v1947 = vsel %vm1934, %v1944, %v1946
      %v1948 = vrot.slane %v1502, 3
      %v1949 = vsel %vm1934, %v1946, %v1948
      %v1950 = vrot.slane %v1503, 3
      %v1951 = vsel %vm1934, %v1948, %v1950
      %v1952 = vrot.slane %v1681, 3
      %v1953 = vsel %vm1934, %v1950, %v1952
      %v1955 = vsel %vm322, %v1937, 0
      %v1958 = vsel %vm322, %v1939, 0
      %v1961 = vsel %vm322, %v1941, 0
      %v1964 = vsel %vm322, %v1943, 0
      %v1967 = vsel %vm322, %v1945, 0
      %v1970 = vsel %vm322, %v1947, 0
      %v1973 = vsel %vm322, %v1949, 0
      %v1976 = vsel %vm322, %v1951, 0
      %v1979 = vsel %vm322, %v1953, 0
      %v1982 = vsel %vm350, %v1930, 0
      %1984 = vmatprep.subr.bf16.mxu0 0
      %1985 = vmatpush1.bf16.msra.mxu0 0
      %1986 = vmatprep.subr.bf16.mxu0 0
      %1987 = vmatpush1.bf16.msra.mxu0 0
      %1988 = vmatprep.subr.bf16.mxu0 0
      %1989 = vmatpush1.bf16.msra.mxu0 0
      %1990 = vmatprep.subr.bf16.mxu0 0
      %1991 = vmatpush1.bf16.msra.mxu0 0
      %1992 = vmatprep.subr.bf16.mxu0 0
      %1993 = vmatpush1.bf16.msra.mxu0 0
      %1994 = vmatprep.subr.bf16.mxu0 0
      %1995 = vmatpush1.bf16.msra.mxu0 0
      %1996 = vmatprep.subr.bf16.mxu0 0
      %1997 = vmatpush1.bf16.msra.mxu0 0
      %1998 = vmatprep.subr.bf16.mxu0 0
      %1999 = vmatpush1.bf16.msra.mxu0 %v1982
      %2000 = vmatprep.subr.bf16.mxu0 0
      %2001 = vmatpush2.bf16.msra.mxu0 0
      %2002 = vmatprep.subr.bf16.mxu0 0
      %2003 = vmatpush2.bf16.msra.mxu0 0
      %2004 = vmatprep.subr.bf16.mxu0 0
      %2005 = vmatpush2.bf16.msra.mxu0 0
      %2006 = vmatprep.subr.bf16.mxu0 0
      %2007 = vmatpush2.bf16.msra.mxu0 0
      %2008 = vmatprep.subr.bf16.mxu0 0
      %2009 = vmatpush2.bf16.msra.mxu0 0
      %2010 = vmatprep.subr.bf16.mxu0 0
      %2011 = vmatpush2.bf16.msra.mxu0 0
      %2012 = vmatprep.subr.bf16.mxu0 0
      %2013 = vmatpush2.bf16.msra.mxu0 0
      %2014 = vmatprep.subr.bf16.mxu0 0
      %2015 = vmatpush2.bf16.msra.mxu0 0
      %2016 = vmatprep.mubr.bf16.mxu0 0
      %2017 = vmatmul.mubr.bf16.gmra.mxu0 %v1955
      %v2018 = vpop.f32.mrf.mxu0
      %v2019 = vadd.f32 0.0, %v2018
      %v2020 = vpop.f32.mrf.mxu0
      %v2021 = vpop.f32.mrf.mxu0
      %v2022 = vadd.f32 0.0, %v2021
      %v2023 = vpop.f32.mrf.mxu0
      %2024 = vmatprep.mubr.bf16.mxu0 0
      %2025 = vmatmul.mubr.bf16.gmra.mxu0 %v1958
      %v2026 = vpop.f32.mrf.mxu0
      %v2027 = vadd.f32 0.0, %v2026
      %v2028 = vpop.f32.mrf.mxu0
      %v2029 = vpop.f32.mrf.mxu0
      %v2030 = vadd.f32 0.0, %v2029
      %v2031 = vpop.f32.mrf.mxu0
      %2032 = vmatprep.mubr.bf16.mxu0 0
      %2033 = vmatmul.mubr.bf16.gmra.mxu0 %v1961
      %v2034 = vpop.f32.mrf.mxu0
      %v2035 = vadd.f32 0.0, %v2034
      %v2036 = vpop.f32.mrf.mxu0
      %v2037 = vpop.f32.mrf.mxu0
      %v2038 = vadd.f32 0.0, %v2037
      %v2039 = vpop.f32.mrf.mxu0
      %2040 = vmatprep.mubr.bf16.mxu0 0
      %2041 = vmatmul.mubr.bf16.gmra.mxu0 %v1964
      %v2042 = vpop.f32.mrf.mxu0
      %v2043 = vadd.f32 0.0, %v2042
      %v2044 = vpop.f32.mrf.mxu0
      %v2045 = vpop.f32.mrf.mxu0
      %v2046 = vadd.f32 0.0, %v2045
      %v2047 = vpop.f32.mrf.mxu0
      %2048 = vmatprep.mubr.bf16.mxu0 0
      %2049 = vmatmul.mubr.bf16.gmra.mxu0 %v1967
      %v2050 = vpop.f32.mrf.mxu0
      %v2051 = vadd.f32 0.0, %v2050
      %v2052 = vpop.f32.mrf.mxu0
      %v2053 = vpop.f32.mrf.mxu0
      %v2054 = vadd.f32 0.0, %v2053
      %v2055 = vpop.f32.mrf.mxu0
      %2056 = vmatprep.mubr.bf16.mxu0 0
      %2057 = vmatmul.mubr.bf16.gmra.mxu0 %v1970
      %v2058 = vpop.f32.mrf.mxu0
      %v2059 = vadd.f32 0.0, %v2058
      %v2060 = vpop.f32.mrf.mxu0
      %v2061 = vpop.f32.mrf.mxu0
      %v2062 = vadd.f32 0.0, %v2061
      %v2063 = vpop.f32.mrf.mxu0
      %2064 = vmatprep.mubr.bf16.mxu0 0
      %2065 = vmatmul.mubr.bf16.gmra.mxu0 %v1973
      %v2066 = vpop.f32.mrf.mxu0
      %v2067 = vadd.f32 0.0, %v2066
      %v2068 = vpop.f32.mrf.mxu0
      %v2069 = vpop.f32.mrf.mxu0
      %v2070 = vadd.f32 0.0, %v2069
      %v2071 = vpop.f32.mrf.mxu0
      %2072 = vmatprep.mubr.bf16.mxu0 0
      %2073 = vmatmul.mubr.bf16.gmra.mxu0 %v1976
      %v2074 = vpop.f32.mrf.mxu0
      %v2075 = vadd.f32 0.0, %v2074
      %v2076 = vpop.f32.mrf.mxu0
      %v2077 = vpop.f32.mrf.mxu0
      %v2078 = vadd.f32 0.0, %v2077
      %v2079 = vpop.f32.mrf.mxu0
      %2080 = vmatprep.mubr.bf16.mxu0 0
      %2081 = vmatmul.mubr.bf16.gmra.mxu0 %v1979
      %v2082 = vpop.f32.mrf.mxu0
      %v2083 = vadd.f32 0.0, %v2082
      %v2084 = vpop.f32.mrf.mxu0
      %v2085 = vpop.f32.mrf.mxu0
      %v2086 = vadd.f32 0.0, %v2085
      %v2087 = vpop.f32.mrf.mxu0
      %2088 = vdwg.mxu0
      %v2089 = vadd.f32 %v1911, %v2019
      %v2090 = vadd.f32 %v1912, %v2022
      %v2091 = vadd.f32 %v1913, %v2027
      %v2092 = vadd.f32 %v1914, %v2030
      %v2093 = vadd.f32 %v1915, %v2035
      %v2094 = vadd.f32 %v1916, %v2038
      %v2095 = vadd.f32 %v1917, %v2043
      %v2096 = vadd.f32 %v1918, %v2046
      %v2097 = vadd.f32 %v1919, %v2051
      %v2098 = vadd.f32 %v1920, %v2054
      %v2099 = vadd.f32 %v1921, %v2059
      %v2100 = vadd.f32 %v1922, %v2062
      %v2101 = vadd.f32 %v1923, %v2067
      %v2102 = vadd.f32 %v1924, %v2070
      %v2103 = vadd.f32 %v1925, %v2075
      %v2104 = vadd.f32 %v1926, %v2078
      %v2105 = vadd.f32 %v1927, %v2083
      %v2106 = vadd.f32 %v1928, %v2086
      %v2107 = vld [vmem:[%s2] sm:$0x1]
      %v2109 = vlaneseq
      %v2110 = vshrl.u32 %v2109, 7
      %v2111 = vsub.s32 0, %v2110
      %v2112 = vrot.slane %v2107, %v2111
      %v2114 = vadd.f32 %v2089, %v2112
      %v2115 = vadd.f32 %v2090, %v2112
      %v2116 = vadd.f32 %v2091, %v2112
      %v2117 = vadd.f32 %v2092, %v2112
      %v2118 = vadd.f32 %v2093, %v2112
      %v2119 = vadd.f32 %v2094, %v2112
      %v2120 = vadd.f32 %v2095, %v2112
      %v2121 = vadd.f32 %v2096, %v2112
      %v2122 = vadd.f32 %v2097, %v2112
      %v2123 = vadd.f32 %v2098, %v2112
      %v2124 = vadd.f32 %v2099, %v2112
      %v2125 = vadd.f32 %v2100, %v2112
      %v2126 = vadd.f32 %v2101, %v2112
      %v2127 = vadd.f32 %v2102, %v2112
      %v2128 = vadd.f32 %v2103, %v2112
      %v2129 = vadd.f32 %v2104, %v2112
      %v2130 = vadd.f32 %v2105, %v2112
      %v2131 = vadd.f32 %v2106, %v2112
      %v2132 = vpack.c.bf16 %v2115, %v2114
      %v2133 = vpack.c.bf16 %v2117, %v2116
      %v2134 = vpack.c.bf16 %v2119, %v2118
      %v2135 = vpack.c.bf16 %v2121, %v2120
      %v2136 = vpack.c.bf16 %v2123, %v2122
      %v2137 = vpack.c.bf16 %v2125, %v2124
      %v2138 = vpack.c.bf16 %v2127, %v2126
      %v2139 = vpack.c.bf16 %v2129, %v2128
      %v2140 = vpack.c.bf16 %v2131, %v2130
      %v2150 = vunpack.c.l.b16 %v2132
      %v2151 = vunpack.c.h.b16 %v2132
      %v2152 = vunpack.c.l.b16 %v2133
      %v2153 = vunpack.c.h.b16 %v2133
      %v2154 = vunpack.c.l.b16 %v2134
      %v2155 = vunpack.c.h.b16 %v2134
      %v2156 = vunpack.c.l.b16 %v2135
      %v2157 = vunpack.c.h.b16 %v2135
      %v2158 = vunpack.c.l.b16 %v2136
      %v2159 = vunpack.c.h.b16 %v2136
      %v2160 = vunpack.c.l.b16 %v2137
      %v2161 = vunpack.c.h.b16 %v2137
      %v2162 = vunpack.c.l.b16 %v2138
      %v2163 = vunpack.c.h.b16 %v2138
      %v2164 = vunpack.c.l.b16 %v2139
      %v2165 = vunpack.c.h.b16 %v2139
      %v2166 = vunpack.c.l.b16 %v2140
      %v2167 = vunpack.c.h.b16 %v2140
      %v2168 = vpack.c.b16 %v2150, %v2150
      %v2169 = vpack.c.b16 %v2151, %v2151
      %v2170 = vpack.c.b16 %v2152, %v2152
      %v2171 = vpack.c.b16 %v2153, %v2153
      %v2172 = vpack.c.b16 %v2154, %v2154
      %v2173 = vpack.c.b16 %v2155, %v2155
      %v2174 = vpack.c.b16 %v2156, %v2156
      %v2175 = vpack.c.b16 %v2157, %v2157
      %v2176 = vpack.c.b16 %v2158, %v2158
      %v2177 = vpack.c.b16 %v2159, %v2159
      %v2178 = vpack.c.b16 %v2160, %v2160
      %v2179 = vpack.c.b16 %v2161, %v2161
      %v2180 = vpack.c.b16 %v2162, %v2162
      %v2181 = vpack.c.b16 %v2163, %v2163
      %v2182 = vpack.c.b16 %v2164, %v2164
      %v2183 = vpack.c.b16 %v2165, %v2165
      %v2184 = vpack.c.b16 %v2166, %v2166
      %v2185 = vpack.c.b16 %v2167, %v2167
      %2204 = vst [vmem:[%s170] sm:$0xf] %v2168
      %2205 = vst [vmem:[%s170 + $0x4] sm:$0xf] %v2169
      %2206 = vst [vmem:[%s170 + $0x8] sm:$0xf] %v2170
      %2207 = vst [vmem:[%s170 + $0xc] sm:$0xf] %v2171
      %2208 = vst [vmem:[%s170 + $0x10] sm:$0xf] %v2172
      %2209 = vst [vmem:[%s170 + $0x14] sm:$0xf] %v2173
      %2210 = vst [vmem:[%s170 + $0x18] sm:$0xf] %v2174
      %2211 = vst [vmem:[%s170 + $0x1c] sm:$0xf] %v2175
      %2212 = vst [vmem:[%s170 + $0x20] sm:$0xf] %v2176
      %2213 = vst [vmem:[%s170 + $0x24] sm:$0xf] %v2177
      %2214 = vst [vmem:[%s170 + $0x28] sm:$0xf] %v2178
      %2215 = vst [vmem:[%s170 + $0x2c] sm:$0xf] %v2179
      %2216 = vst [vmem:[%s170 + $0x30] sm:$0xf] %v2180
      %2217 = vst [vmem:[%s170 + $0x34] sm:$0xf] %v2181
      %2218 = vst [vmem:[%s170 + $0x38] sm:$0xf] %v2182
      %2219 = vst [vmem:[%s170 + $0x3c] sm:$0xf] %v2183
      %2220 = vst [vmem:[%s170 + $0x40] sm:$0xf] %v2184
      %2221 = vst [vmem:[%s170 + $0x44] sm:$0xf] %v2185
      %p2222 = scmp.lt.s32.totalorder %s14, 3
      %s2223 = scalar_select %p2222, %s14, 3
      %s2224 = smul.addr %s2223, 18
      %s2225 = smul.addr %s2224, 4
      %s2226 = scalar_lea.vmem %s3, %s2225
      // Predicated region
      $region33: #{conv3x3.1} parent=31 // pred_check
        %p2227 = pneg %p100
      $region34: #{conv3x3.1} parent=31 // pred_check_branch
        %2229 = sbr.rel (%p2227) target = $region36
      $region35: #{conv3x3.1} parent=31 // pred_region
        _
      $region36: #{conv3x3.1} parent=31 // pred_fallthru
        _
    $region32: #{conv3x3.1} parent=5 // pred_fallthru
      _
    %p2230 = scmp.le.s32.totalorder 2, %s9
    // Predicated region
    $region37: #{conv3x3.1} parent=5 // pred_check
      %p2231 = pneg %p2230
    $region38: #{conv3x3.1} parent=5 // pred_check_branch
      %2233 = sbr.rel (%p2231) target = $region40
    $region39: #{conv3x3.1} parent=5 // pred_region
      %s2234 = ssub.s32 %s9, 2
      // Predicated region
      $region41: #{conv3x3.1} parent=39 // pred_check
        %p2235 = pneg %p106
      $region42: #{conv3x3.1} parent=39 // pred_check_branch
        %2237 = sbr.rel (%p2235) target = $region44
      $region43: #{conv3x3.1} parent=39 // pred_region
        %p2238 = scmp.lt.s32.totalorder %s15, 3
        %s2239 = scalar_select %p2238, %s15, 3
        %s2240 = smul.addr %s2239, 18
        %s2241 = smul.addr %s2240, 4
        %s2242 = scalar_lea.vmem %s3, %s2241
      $region44: #{conv3x3.1} parent=39 // pred_fallthru
        _
    $region40: #{conv3x3.1} parent=5 // pred_fallthru
      _
  $region6: #{conv3x3.1} parent=0 // loop_footer
    %s13 = sadd.s32 1, %s9
  $region7: #{conv3x3.1} parent=0 // loop_footer_branch
    %8 = sbr.rel target = $region3
  $region8: #{conv3x3.1} parent=0 // loop_exit
    _

</llo_original>
